<compile_context>
chip_gen: v6e
topology: v6e:2x2x1
jax: 0.10.0
libtpu: 0.0.40
codegen_flags: <defaults>
</compile_context>

<pallas_src>
import jax
import jax.numpy as jnp
from jax import lax
from jax.experimental import pallas as pl
from jax.experimental.pallas import tpu as pltpu


# --------------------------------------------------------------------------- #
# Pass 1: reduction over item tiles -> gram (B,B) and pvf (B,Ki)
# --------------------------------------------------------------------------- #
def _reduce_kernel(uvs_ref, uvec_ref, ifilt_ref, p_ref, v_ref,
                   gram_ref, pvf_ref, pv_acc):
    t = pl.program_id(0)

    @pl.when(t == 0)
    def _():
        pv_acc[...] = jnp.zeros_like(pv_acc)

    # Accumulate pv = P @ V over the item axis (bf16 inputs, f32 accumulation).
    pv_acc[...] += jnp.dot(p_ref[...], v_ref[...],
                           preferred_element_type=jnp.float32)

    @pl.when(t == pl.num_programs(0) - 1)
    def _():
        # gram = (U_b * f_u) @ U_b^T, contracted on the last dims (no .T).
        gram = lax.dot_general(uvs_ref[...], uvec_ref[...],
                               (((1,), (1,)), ((), ())),
                               preferred_element_type=jnp.float32)
        gram_ref[...] = gram.astype(gram_ref.dtype)
        pvf_ref[...] = (pv_acc[...] * ifilt_ref[...]).astype(pvf_ref.dtype)


# --------------------------------------------------------------------------- #
# Pass 2: stream item tiles -> out_tile = 0.5*(gram @ P_tile + pvf @ V_tile^T)
# --------------------------------------------------------------------------- #
def _output_kernel(gram_ref, pvf_ref, p_ref, v_ref, out_ref):
    s_u = jnp.dot(gram_ref[...], p_ref[...],
                  preferred_element_type=jnp.float32)
    s_i = lax.dot_general(pvf_ref[...], v_ref[...],
                          (((1,), (1,)), ((), ())),
                          preferred_element_type=jnp.float32)
    out_ref[...] = 0.5 * (s_u + s_i)


# --------------------------------------------------------------------------- #
# Wrapper
# --------------------------------------------------------------------------- #
def simplified_spectral_cf_forward(users, adj, user_eigenvals, user_eigenvecs,
                                   item_eigenvals, item_eigenvecs,
                                   *, tile_n=512,
                                   vmem_limit_bytes=48 * 1024 * 1024):
    # --- glue: gather + spectral filter (tiny, per-call) --------------------
    P = adj[users].astype(jnp.float32)               # (B, N), binary -> bf16 exact
    Ub = user_eigenvecs[users].astype(jnp.float32)   # (B, Ku)
    ufilt = (1.0 - user_eigenvals.astype(jnp.float32)) ** 6
    ifilt = (1.0 - item_eigenvals.astype(jnp.float32)) ** 6
    u_scaled = Ub * ufilt[None, :]                   # hoisted filter scaling

    B, N = P.shape
    Ku = Ub.shape[1]
    Ki = item_eigenvecs.shape[1]

    # --- pad to TPU-friendly shapes ------------------------------------------
    tile_n = max(128, (tile_n // 128) * 128)         # lane-dense item tiles
    b_pad = (-B) % 16                                # bf16 sublane tile
    n_pad = (-N) % tile_n
    V = item_eigenvecs.astype(jnp.float32)
    if b_pad:
        P = jnp.pad(P, ((0, b_pad), (0, 0)))
        Ub = jnp.pad(Ub, ((0, b_pad), (0, 0)))
        u_scaled = jnp.pad(u_scaled, ((0, b_pad), (0, 0)))
    if n_pad:
        P = jnp.pad(P, ((0, 0), (0, n_pad)))
        V = jnp.pad(V, ((0, n_pad), (0, 0)))
    Bp, Np = P.shape
    n_tiles = Np // tile_n

    # bf16 streamed operands (halve HBM traffic, full-rate MXU); f32 accumulation.
    P_bf = P.astype(jnp.bfloat16)
    V_bf = V.astype(jnp.bfloat16)
    ifilt_row = ifilt.reshape(1, Ki)

    const2 = lambda t: (0, 0)

    # --- pass 1: reduction over item tiles -----------------------------------
    gram, pvf = pl.pallas_call(
        _reduce_kernel,
        out_shape=(jax.ShapeDtypeStruct((Bp, Bp), jnp.bfloat16),
                   jax.ShapeDtypeStruct((Bp, Ki), jnp.bfloat16)),
        grid_spec=pltpu.PrefetchScalarGridSpec(
            num_scalar_prefetch=0,
            grid=(n_tiles,),
            in_specs=[
                pl.BlockSpec((Bp, Ku), const2),                 # U_b * f_u (resident)
                pl.BlockSpec((Bp, Ku), const2),                 # U_b       (resident)
                pl.BlockSpec((1, Ki), const2),                  # f_i row   (resident)
                pl.BlockSpec((Bp, tile_n), lambda t: (0, t)),   # P tile (streamed)
                pl.BlockSpec((tile_n, Ki), lambda t: (t, 0)),   # V tile (streamed)
            ],
            out_specs=[
                pl.BlockSpec((Bp, Bp), const2),                 # gram
                pl.BlockSpec((Bp, Ki), const2),                 # pvf
            ],
            scratch_shapes=[pltpu.VMEM((Bp, Ki), jnp.float32)],
        ),
        compiler_params=pltpu.CompilerParams(
            dimension_semantics=("arbitrary",),
            vmem_limit_bytes=vmem_limit_bytes),
    )(u_scaled, Ub, ifilt_row, P_bf, V_bf)

    # --- pass 2: stream item tiles, lane-dense output ------------------------
    out = pl.pallas_call(
        _output_kernel,
        out_shape=jax.ShapeDtypeStruct((Bp, Np), jnp.float32),
        grid_spec=pltpu.PrefetchScalarGridSpec(
            num_scalar_prefetch=0,
            grid=(n_tiles,),
            in_specs=[
                pl.BlockSpec((Bp, Bp), const2),                 # gram (resident)
                pl.BlockSpec((Bp, Ki), const2),                 # pvf  (resident)
                pl.BlockSpec((Bp, tile_n), lambda t: (0, t)),   # P tile
                pl.BlockSpec((tile_n, Ki), lambda t: (t, 0)),   # V tile
            ],
            out_specs=pl.BlockSpec((Bp, tile_n), lambda t: (0, t)),
        ),
        compiler_params=pltpu.CompilerParams(
            dimension_semantics=("parallel",),                  # 2 TCs on v7x
            vmem_limit_bytes=vmem_limit_bytes),
    )(gram, pvf, P_bf, V_bf)

    return out[:B, :N]


# --------------------------------------------------------------------------- #
# Pure-JAX reference mirroring the PyTorch forward exactly (f32)
# --------------------------------------------------------------------------- #
def reference_forward(users, adj, user_eigenvals, user_eigenvecs,
                      item_eigenvals, item_eigenvecs):
    P = adj[users]
    Ub = user_eigenvecs[users]
    fu = (1.0 - user_eigenvals) ** 6
    fi = (1.0 - item_eigenvals) ** 6
    s_u = ((Ub * fu[None, :]) @ Ub.T) @ P
    s_i = ((P @ item_eigenvecs) * fi[None, :]) @ item_eigenvecs.T
    return 0.5 * (s_u + s_i)


if __name__ == "__main__":
    key = jax.random.PRNGKey(0)
    k_adj, k_ue, k_uv, k_ie, k_iv, k_users = jax.random.split(key, 6)

    n_users, n_items = 512, 2048
    u_n_eigen, i_n_eigen = 8, 40          # module defaults
    batch = 256                            # fill the MXU M-dim

    # Deterministic synthetic "trained" state (shapes match the module buffers).
    adj = jax.random.bernoulli(k_adj, p=0.1,
                               shape=(n_users, n_items)).astype(jnp.float32)
    user_eigenvals = jax.random.uniform(k_ue, (u_n_eigen,), dtype=jnp.float32)
    user_eigenvecs = jax.random.normal(k_uv, (n_users, u_n_eigen),
                                       dtype=jnp.float32) * 0.1
    item_eigenvals = jax.random.uniform(k_ie, (i_n_eigen,), dtype=jnp.float32)
    item_eigenvecs = jax.random.normal(k_iv, (n_items, i_n_eigen),
                                       dtype=jnp.float32) * 0.1
    users = jax.random.randint(k_users, (batch,), 0, n_users, dtype=jnp.int32)

    out = simplified_spectral_cf_forward(users, adj, user_eigenvals,
                                         user_eigenvecs, item_eigenvals,
                                         item_eigenvecs, tile_n=512)
    out = jax.block_until_ready(out)

    ref = reference_forward(users, adj, user_eigenvals, user_eigenvecs,
                            item_eigenvals, item_eigenvecs)
    assert out.shape == (batch, n_items)
    # bf16 streamed operands with f32 accumulation -> small quantization error.
    assert jnp.allclose(out, ref, atol=2e-2, rtol=2e-2), (
        f"mismatch vs reference, max|diff|={float(jnp.max(jnp.abs(out - ref)))}")

    print("KERNEL_OK")
</pallas_src>

<mosaic_0001>
module attributes {stable_mosaic.version = 11 : i64} {
  func.func @_reduce_kernel(%arg0: i32, %arg1: memref<256x8xf32, #tpu.memory_space<vmem>>, %arg2: memref<256x8xf32, #tpu.memory_space<vmem>>, %arg3: memref<1x40xf32, #tpu.memory_space<vmem>>, %arg4: memref<256x512xbf16, #tpu.memory_space<vmem>>, %arg5: memref<512x40xbf16, #tpu.memory_space<vmem>>, %arg6: memref<256x256xbf16, #tpu.memory_space<vmem>>, %arg7: memref<256x40xbf16, #tpu.memory_space<vmem>>, %arg8: memref<256x40xf32, #tpu.memory_space<vmem>>) attributes {dimension_semantics = [#tpu.dimension_semantics<arbitrary>], iteration_bounds = array<i64: 4>, scalar_prefetch = 0 : i64, scratch_operands = 1 : i64, tpu.core_type = #tpu.core_type<tc>, window_params = [{pipeline_mode = #tpu.pipeline_mode<synchronous>, transform_indices = @transform_0, window_bounds = array<i64: 256, 8>}, {pipeline_mode = #tpu.pipeline_mode<synchronous>, transform_indices = @transform_1, window_bounds = array<i64: 256, 8>}, {pipeline_mode = #tpu.pipeline_mode<synchronous>, transform_indices = @transform_2, window_bounds = array<i64: 1, 40>}, {transform_indices = @transform_3, window_bounds = array<i64: 256, 512>}, {transform_indices = @transform_4, window_bounds = array<i64: 512, 40>}, {pipeline_mode = #tpu.pipeline_mode<synchronous>, transform_indices = @transform_5, window_bounds = array<i64: 256, 256>}, {pipeline_mode = #tpu.pipeline_mode<synchronous>, transform_indices = @transform_6, window_bounds = array<i64: 256, 40>}]} {
    %c0_i32 = arith.constant 0 : i32
    %0 = arith.cmpi eq, %arg0, %c0_i32 : i32
    %1 = arith.extui %0 : i1 to i32
    %c0_i32_0 = arith.constant 0 : i32
    %2 = arith.cmpi ne, %1, %c0_i32_0 : i32
    scf.if %2 {
      %cst_9 = arith.constant 0.000000e+00 : f32
      %12 = vector.broadcast %cst_9 : f32 to vector<256x40xf32>
      %c0_10 = arith.constant 0 : index
      %c0_11 = arith.constant 0 : index
      %13 = vector.load %arg8[%c0_10, %c0_11] : memref<256x40xf32, #tpu.memory_space<vmem>>, vector<256x40xf32>
      tpu.vector_store %arg8[%c0_10, %c0_11], %12 {strides = array<i32>} : memref<256x40xf32, #tpu.memory_space<vmem>>, vector<256x40xf32>,
    } else {
    }
    %c0 = arith.constant 0 : index
    %c0_1 = arith.constant 0 : index
    %3 = vector.load %arg8[%c0, %c0_1] : memref<256x40xf32, #tpu.memory_space<vmem>>, vector<256x40xf32>
    %c0_2 = arith.constant 0 : index
    %c0_3 = arith.constant 0 : index
    %4 = vector.load %arg4[%c0_2, %c0_3] : memref<256x512xbf16, #tpu.memory_space<vmem>>, vector<256x512xbf16>
    %c0_4 = arith.constant 0 : index
    %c0_5 = arith.constant 0 : index
    %5 = vector.load %arg5[%c0_4, %c0_5] : memref<512x40xbf16, #tpu.memory_space<vmem>>, vector<512x40xbf16>
    %cst = arith.constant dense<0.000000e+00> : vector<256x40xf32>
    %6 = tpu.matmul %4, %5, %cst {dimension_numbers = #tpu.dot_dimension_numbers<[1], [0], [0], [1], [0, 0, 1, 1], [], []>} : vector<256x512xbf16>, vector<512x40xbf16>, vector<256x40xf32> -> vector<256x40xf32>
    %7 = arith.addf %3, %6 : vector<256x40xf32>
    %c0_6 = arith.constant 0 : index
    %c0_7 = arith.constant 0 : index
    %8 = vector.load %arg8[%c0_6, %c0_7] : memref<256x40xf32, #tpu.memory_space<vmem>>, vector<256x40xf32>
    tpu.vector_store %arg8[%c0_6, %c0_7], %7 {strides = array<i32>} : memref<256x40xf32, #tpu.memory_space<vmem>>, vector<256x40xf32>,
    %c3_i32 = arith.constant 3 : i32
    %9 = arith.cmpi eq, %arg0, %c3_i32 : i32
    %10 = arith.extui %9 : i1 to i32
    %c0_i32_8 = arith.constant 0 : i32
    %11 = arith.cmpi ne, %10, %c0_i32_8 : i32
    scf.if %11 {
      %c0_9 = arith.constant 0 : index
      %c0_10 = arith.constant 0 : index
      %12 = vector.load %arg1[%c0_9, %c0_10] : memref<256x8xf32, #tpu.memory_space<vmem>>, vector<256x8xf32>
      %c0_11 = arith.constant 0 : index
      %c0_12 = arith.constant 0 : index
      %13 = vector.load %arg2[%c0_11, %c0_12] : memref<256x8xf32, #tpu.memory_space<vmem>>, vector<256x8xf32>
      %cst_13 = arith.constant dense<0.000000e+00> : vector<256x256xf32>
      %14 = tpu.matmul %12, %13, %cst_13 {dimension_numbers = #tpu.dot_dimension_numbers<[1], [1], [0], [0], [0, 0, 1, 0], [], []>} : vector<256x8xf32>, vector<256x8xf32>, vector<256x256xf32> -> vector<256x256xf32>
      %15 = arith.truncf %14 : vector<256x256xf32> to vector<256x256xbf16>
      %c0_14 = arith.constant 0 : index
      %c0_15 = arith.constant 0 : index
      %16 = vector.load %arg6[%c0_14, %c0_15] : memref<256x256xbf16, #tpu.memory_space<vmem>>, vector<256x256xbf16>
      tpu.vector_store %arg6[%c0_14, %c0_15], %15 {strides = array<i32>} : memref<256x256xbf16, #tpu.memory_space<vmem>>, vector<256x256xbf16>,
      %c0_16 = arith.constant 0 : index
      %c0_17 = arith.constant 0 : index
      %17 = vector.load %arg8[%c0_16, %c0_17] : memref<256x40xf32, #tpu.memory_space<vmem>>, vector<256x40xf32>
      %c0_18 = arith.constant 0 : index
      %c0_19 = arith.constant 0 : index
      %18 = vector.load %arg3[%c0_18, %c0_19] : memref<1x40xf32, #tpu.memory_space<vmem>>, vector<1x40xf32>
      %19 = vector.broadcast %18 : vector<1x40xf32> to vector<256x40xf32>
      %20 = arith.mulf %17, %19 : vector<256x40xf32>
      %21 = arith.truncf %20 : vector<256x40xf32> to vector<256x40xbf16>
      %c0_20 = arith.constant 0 : index
      %c0_21 = arith.constant 0 : index
      %22 = vector.load %arg7[%c0_20, %c0_21] : memref<256x40xbf16, #tpu.memory_space<vmem>>, vector<256x40xbf16>
      tpu.vector_store %arg7[%c0_20, %c0_21], %21 {strides = array<i32>} : memref<256x40xbf16, #tpu.memory_space<vmem>>, vector<256x40xbf16>,
    } else {
    }
    return
  }
  func.func @transform_0(%arg0: i32) -> (i32, i32) {
    %c0_i32 = arith.constant 0 : i32
    %c0_i32_0 = arith.constant 0 : i32
    %c0_i32_1 = arith.constant 0 : i32
    return %c0_i32, %c0_i32_0 : i32, i32
  }
  func.func @transform_1(%arg0: i32) -> (i32, i32) {
    %c0_i32 = arith.constant 0 : i32
    %c0_i32_0 = arith.constant 0 : i32
    %c0_i32_1 = arith.constant 0 : i32
    return %c0_i32, %c0_i32_0 : i32, i32
  }
  func.func @transform_2(%arg0: i32) -> (i32, i32) {
    %c0_i32 = arith.constant 0 : i32
    %c0_i32_0 = arith.constant 0 : i32
    %c0_i32_1 = arith.constant 0 : i32
    return %c0_i32, %c0_i32_0 : i32, i32
  }
  func.func @transform_3(%arg0: i32) -> (i32, i32) {
    %c0_i32 = arith.constant 0 : i32
    %c0_i32_0 = arith.constant 0 : i32
    return %c0_i32, %arg0 : i32, i32
  }
  func.func @transform_4(%arg0: i32) -> (i32, i32) {
    %c0_i32 = arith.constant 0 : i32
    %c0_i32_0 = arith.constant 0 : i32
    return %arg0, %c0_i32 : i32, i32
  }
  func.func @transform_5(%arg0: i32) -> (i32, i32) {
    %c0_i32 = arith.constant 0 : i32
    %c0_i32_0 = arith.constant 0 : i32
    %c0_i32_1 = arith.constant 0 : i32
    return %c0_i32, %c0_i32_0 : i32, i32
  }
  func.func @transform_6(%arg0: i32) -> (i32, i32) {
    %c0_i32 = arith.constant 0 : i32
    %c0_i32_0 = arith.constant 0 : i32
    %c0_i32_1 = arith.constant 0 : i32
    return %c0_i32, %c0_i32_0 : i32, i32
  }
}

</mosaic_0001>

<llo_original>
// kernel: tpu_custom_call.1
$region0: #{tpu_custom_call.1}
  #allocation0 [shape = 'u32[]', space=smem, size = 0x4, offset = 0x4, fixed_abs, tag = 'smem constant byte address 0x4 - core index']
  #allocation1 [shape = 'u32[144,128]{1,0:T(1,128)}', space=vmem, size = 0x12000, scoped, tag = 'internal scratch']
  #allocation2 [shape = 'f32[256,40]{1,0:T(8,128)}', space=vmem, size = 0x20000, scoped, tag = 'scratch operand']
  %s0 = inlined_call_operand.vmem [shape: f32[256,8], index: 0, kind: input, shape index: {}]
  %s1 = inlined_call_operand.vmem [shape: f32[256,8], index: 1, kind: input, shape index: {}]
  %s2 = inlined_call_operand.vmem [shape: f32[1,40], index: 2, kind: input, shape index: {}]
  %s3 = inlined_call_operand.hbm [shape: bf16[256,2048], index: 3, kind: input, shape index: {}]
  %s4 = inlined_call_operand.vmem [shape: bf16[2048,40], index: 4, kind: input, shape index: {}]
  %s5 = inlined_call_operand.hbm [shape: bf16[256,256], index: 5, kind: output, shape index: {0}]
  %s6 = inlined_call_operand.vmem [shape: bf16[256,40], index: 6, kind: output, shape index: {1}]
  %7 = xla_tuple %s5, %s6
  %s8 = sld [smem:[#allocation0]]
  $region73: #{tpu_custom_call.1} parent=0
    _
  %s10 = ssub.s32 1, %s8
  %s11 = scalar_select 0, %s10, %s8
  $region1: #{tpu_custom_call.1} parent=0
    #allocation3 [shape = 'u8[524288]{0}', space=vmem, size = 0x80000, scoped, tag = 'input window, operand 3']
    #allocation4 [shape = 's32[2]{0}', space=sflag, size = 0x8, scoped, tag = 'scoped memory for tpu_custom_call.1']
    #allocation5 [shape = 's32[2]{0}', space=sflag, size = 0x8, scoped, tag = 'scoped memory for tpu_custom_call.1']
    #allocation6 [shape = 'u8[131072]{0}', space=vmem, size = 0x20000, scoped, tag = 'output window, operand 0, single buffered']
    %12 = vsyncpa [#allocation4], 0
    %s13 = scalar_lea.sflag [#allocation4], 1
    %14 = vsyncpa %s13, 0
    %15 = vsyncpa [#allocation5], 0
    loop: start=0, step=1, limit=6
    $region2: #{tpu_custom_call.1} parent=1 // loop_pre_header
      _
    $region3: #{tpu_custom_call.1} parent=1 // loop_header
      %s17 = sphi 0, %s21
      %p18 = scmp.ge.s32.totalorder %s17, 6
      %s25 = sphi 0, %s25
      %s27 = sphi 0, %s25
      %s28 = sphi 0, %s27
      %s42 = sphi 0, %s28
      %s46 = sphi 0, %s46
      %s48 = sphi 0, %s46
      %s49 = sphi 0, %s48
      %s63 = sphi 0, %s49
      %s67 = sphi 0, %s67
      %s69 = sphi 0, %s67
      %s70 = sphi 0, %s69
      %s84 = sphi 0, %s70
      %s90 = sphi 0, %s92
      %s93 = sphi 0, %s90
      %s94 = sphi 0, %s93
      %s110 = sphi 0, %s94
      %s116 = sphi 0, %s118
      %s119 = sphi 0, %s116
      %s120 = sphi 0, %s119
      %s136 = sphi 0, %s120
      %s140 = sphi 0, %s140
      %s142 = sphi 0, %s140
      %s143 = sphi 0, %s142
      %s157 = sphi 0, %s143
      %s161 = sphi 0, %s161
      %s163 = sphi 0, %s161
      %s164 = sphi 0, %s163
      %s178 = sphi 0, %s164
    $region4: #{tpu_custom_call.1} parent=1 // loop_header_branch
      %20 = sbr.rel (%p18) target = $region8
    $region5: #{tpu_custom_call.1} parent=1 // loop_body
      %s22 = ssub.s32 %s17, 1
      %s23 = ssub.s32 %s17, 2
      %s24 = sadd.s32 %s17, 1
      %s26 = sadd.s32 %s25, 1
      %p29 = scmp.eq.s32.totalorder %s17, 3
      %p30 = scmp.ne.s32.totalorder %s25, %s27
      %p31 = scmp.eq.s32.totalorder %s17, 0
      %p32 = por %p30, %p31
      %p33 = scmp.ne.s32.totalorder %s25, %s27
      %p34 = scmp.eq.s32.totalorder %s22, 3
      %p35 = por %p33, %p34
      %p36 = scmp.ne.s32.totalorder %s27, %s28
      %p37 = scmp.eq.s32.totalorder %s22, 0
      %p38 = por %p36, %p37
      %p39 = scmp.ne.s32.totalorder %s27, %s28
      %p40 = scmp.eq.s32.totalorder %s23, 3
      %p41 = por %p39, %p40
      %p43 = scmp.ne.s32.totalorder %s28, %s42
      %p44 = scmp.eq.s32.totalorder %s23, 0
      %p45 = por %p43, %p44
      %s47 = sadd.s32 %s46, 1
      %p50 = scmp.eq.s32.totalorder %s17, 3
      %p51 = scmp.ne.s32.totalorder %s46, %s48
      %p52 = scmp.eq.s32.totalorder %s17, 0
      %p53 = por %p51, %p52
      %p54 = scmp.ne.s32.totalorder %s46, %s48
      %p55 = scmp.eq.s32.totalorder %s22, 3
      %p56 = por %p54, %p55
      %p57 = scmp.ne.s32.totalorder %s48, %s49
      %p58 = scmp.eq.s32.totalorder %s22, 0
      %p59 = por %p57, %p58
      %p60 = scmp.ne.s32.totalorder %s48, %s49
      %p61 = scmp.eq.s32.totalorder %s23, 3
      %p62 = por %p60, %p61
      %p64 = scmp.ne.s32.totalorder %s49, %s63
      %p65 = scmp.eq.s32.totalorder %s23, 0
      %p66 = por %p64, %p65
      %s68 = sadd.s32 %s67, 1
      %p71 = scmp.eq.s32.totalorder %s17, 3
      %p72 = scmp.ne.s32.totalorder %s67, %s69
      %p73 = scmp.eq.s32.totalorder %s17, 0
      %p74 = por %p72, %p73
      %p75 = scmp.ne.s32.totalorder %s67, %s69
      %p76 = scmp.eq.s32.totalorder %s22, 3
      %p77 = por %p75, %p76
      %p78 = scmp.ne.s32.totalorder %s69, %s70
      %p79 = scmp.eq.s32.totalorder %s22, 0
      %p80 = por %p78, %p79
      %p81 = scmp.ne.s32.totalorder %s69, %s70
      %p82 = scmp.eq.s32.totalorder %s23, 3
      %p83 = por %p81, %p82
      %p85 = scmp.ne.s32.totalorder %s70, %s84
      %p86 = scmp.eq.s32.totalorder %s23, 0
      %p87 = por %p85, %p86
      %s88 = ssub.s32 %s17, %s24
      %p89 = scmp.eq.s32.totalorder %s88, 0
      %s91 = sadd.s32 %s90, 1
      %s92 = scalar_select %p89, %s90, %s91
      %p95 = pneg %p89
      %p96 = scmp.eq.s32.totalorder %s17, 3
      %p97 = por %p95, %p96
      %p98 = scmp.ne.s32.totalorder %s90, %s93
      %p99 = scmp.eq.s32.totalorder %s17, 0
      %p100 = por %p98, %p99
      %p101 = scmp.ne.s32.totalorder %s90, %s93
      %p102 = scmp.eq.s32.totalorder %s22, 3
      %p103 = por %p101, %p102
      %p104 = scmp.ne.s32.totalorder %s93, %s94
      %p105 = scmp.eq.s32.totalorder %s22, 0
      %p106 = por %p104, %p105
      %p107 = scmp.ne.s32.totalorder %s93, %s94
      %p108 = scmp.eq.s32.totalorder %s23, 3
      %p109 = por %p107, %p108
      %p111 = scmp.ne.s32.totalorder %s94, %s110
      %p112 = scmp.eq.s32.totalorder %s23, 0
      %p113 = por %p111, %p112
      %s114 = ssub.s32 %s17, %s24
      %p115 = scmp.eq.s32.totalorder %s114, 0
      %s117 = sadd.s32 %s116, 1
      %s118 = scalar_select %p115, %s116, %s117
      %p121 = pneg %p115
      %p122 = scmp.eq.s32.totalorder %s17, 3
      %p123 = por %p121, %p122
      %p124 = scmp.ne.s32.totalorder %s116, %s119
      %p125 = scmp.eq.s32.totalorder %s17, 0
      %p126 = por %p124, %p125
      %p127 = scmp.ne.s32.totalorder %s116, %s119
      %p128 = scmp.eq.s32.totalorder %s22, 3
      %p129 = por %p127, %p128
      %p130 = scmp.ne.s32.totalorder %s119, %s120
      %p131 = scmp.eq.s32.totalorder %s22, 0
      %p132 = por %p130, %p131
      %p133 = scmp.ne.s32.totalorder %s119, %s120
      %p134 = scmp.eq.s32.totalorder %s23, 3
      %p135 = por %p133, %p134
      %p137 = scmp.ne.s32.totalorder %s120, %s136
      %p138 = scmp.eq.s32.totalorder %s23, 0
      %p139 = por %p137, %p138
      %s141 = sadd.s32 %s140, 1
      %p144 = scmp.eq.s32.totalorder %s17, 3
      %p145 = scmp.ne.s32.totalorder %s140, %s142
      %p146 = scmp.eq.s32.totalorder %s17, 0
      %p147 = por %p145, %p146
      %p148 = scmp.ne.s32.totalorder %s140, %s142
      %p149 = scmp.eq.s32.totalorder %s22, 3
      %p150 = por %p148, %p149
      %p151 = scmp.ne.s32.totalorder %s142, %s143
      %p152 = scmp.eq.s32.totalorder %s22, 0
      %p153 = por %p151, %p152
      %p154 = scmp.ne.s32.totalorder %s142, %s143
      %p155 = scmp.eq.s32.totalorder %s23, 3
      %p156 = por %p154, %p155
      %p158 = scmp.ne.s32.totalorder %s143, %s157
      %p159 = scmp.eq.s32.totalorder %s23, 0
      %p160 = por %p158, %p159
      %s162 = sadd.s32 %s161, 1
      %p165 = scmp.eq.s32.totalorder %s17, 3
      %p166 = scmp.ne.s32.totalorder %s161, %s163
      %p167 = scmp.eq.s32.totalorder %s17, 0
      %p168 = por %p166, %p167
      %p169 = scmp.ne.s32.totalorder %s161, %s163
      %p170 = scmp.eq.s32.totalorder %s22, 3
      %p171 = por %p169, %p170
      %p172 = scmp.ne.s32.totalorder %s163, %s164
      %p173 = scmp.eq.s32.totalorder %s22, 0
      %p174 = por %p172, %p173
      %p175 = scmp.ne.s32.totalorder %s163, %s164
      %p176 = scmp.eq.s32.totalorder %s23, 3
      %p177 = por %p175, %p176
      %p179 = scmp.ne.s32.totalorder %s164, %s178
      %p180 = scmp.eq.s32.totalorder %s23, 0
      %p181 = por %p179, %p180
      %p182 = scmp.le.s32.totalorder 1, %s17
      %p183 = scmp.lt.s32.totalorder %s17, 5
      %p184 = pnand %p182, %p183
      %p185 = pneg %p184
      // Predicated region
      $region9: #{tpu_custom_call.1} parent=5 // pred_check
        _
      $region10: #{tpu_custom_call.1} parent=5 // pred_check_branch
        %187 = sbr.rel (%p184) target = $region12
      $region11: #{tpu_custom_call.1} parent=5 // pred_region
        %s188 = ssub.s32 %s17, 1
        // Predicated region
        $region13: #{tpu_custom_call.1} parent=11 // pred_check
          %p189 = pneg %p38
        $region14: #{tpu_custom_call.1} parent=11 // pred_check_branch
          %191 = sbr.rel (%p189) target = $region16
        $region15: #{tpu_custom_call.1} parent=11 // pred_region
          _
        $region16: #{tpu_custom_call.1} parent=11 // pred_fallthru
          _
        // Predicated region
        $region17: #{tpu_custom_call.1} parent=11 // pred_check
          %p192 = pneg %p59
        $region18: #{tpu_custom_call.1} parent=11 // pred_check_branch
          %194 = sbr.rel (%p192) target = $region20
        $region19: #{tpu_custom_call.1} parent=11 // pred_region
          _
        $region20: #{tpu_custom_call.1} parent=11 // pred_fallthru
          _
        // Predicated region
        $region21: #{tpu_custom_call.1} parent=11 // pred_check
          %p195 = pneg %p80
        $region22: #{tpu_custom_call.1} parent=11 // pred_check_branch
          %197 = sbr.rel (%p195) target = $region24
        $region23: #{tpu_custom_call.1} parent=11 // pred_region
          _
        $region24: #{tpu_custom_call.1} parent=11 // pred_fallthru
          _
      $region12: #{tpu_custom_call.1} parent=5 // pred_fallthru
        _
      %p198 = scmp.lt.s32.totalorder %s17, 4
      // Predicated region
      $region25: #{tpu_custom_call.1} parent=5 // pred_check
        %p199 = pneg %p198
      $region26: #{tpu_custom_call.1} parent=5 // pred_check_branch
        %201 = sbr.rel (%p199) target = $region28
      $region27: #{tpu_custom_call.1} parent=5 // pred_region
        // Predicated region
        $region29: #{tpu_custom_call.1} parent=27 // pred_check
          %p202 = pneg %p100
        $region30: #{tpu_custom_call.1} parent=27 // pred_check_branch
          %204 = sbr.rel (%p202) target = $region32
        $region31: #{tpu_custom_call.1} parent=27 // pred_region
          %s205 = sand.u32 %s90, 1
          %s206 = scalar_lea.sflag [#allocation4], %s205
          %s207 = sand.u32 %s90, 1
          %s208 = smul.addr %s207, 512
          %s209 = scalar_lea.vmem [#allocation3], %s208
          %s210 = smul.u32 4, %s17
          %s212 = ssub.s32 8192, 8192
          %213 = vsyncadd %s206, %s212
          %s214 = smul.addr %s210, 64
          %s215 = scalar_lea.hbm %s3, %s214
          %s216 = sshll.u32 %s209, 4
          %s217 = int_to_ptr.vmem [resolvable:$true] %s216
          %222 = dma.hbm_to_vmem [thread:$0]  %s215, 8192, %s217, %s206, 1024, 256, 16
        $region32: #{tpu_custom_call.1} parent=27 // pred_fallthru
          _
        // Predicated region
        $region33: #{tpu_custom_call.1} parent=27 // pred_check
          %p223 = pneg %p126
        $region34: #{tpu_custom_call.1} parent=27 // pred_check_branch
          %225 = sbr.rel (%p223) target = $region36
        $region35: #{tpu_custom_call.1} parent=27 // pred_region
          %s226 = smul.u32 64, %s17
          %p227 = scmp.lt.s32.totalorder %s226, 255
          %s228 = scalar_select %p227, %s226, 255
          %s229 = smul.addr %s228, 4
          %s230 = scalar_lea.vmem %s4, %s229
          %s231 = smul.u32 64, %s17
        $region36: #{tpu_custom_call.1} parent=27 // pred_fallthru
          _
      $region28: #{tpu_custom_call.1} parent=5 // pred_fallthru
        _
      %p232 = scmp.le.s32.totalorder 1, %s17
      %p233 = scmp.lt.s32.totalorder %s17, 5
      %p234 = pnand %p232, %p233
      %p235 = pneg %p234
      // Predicated region
      $region37: #{tpu_custom_call.1} parent=5 // pred_check
        _
      $region38: #{tpu_custom_call.1} parent=5 // pred_check_branch
        %237 = sbr.rel (%p234) target = $region40
      $region39: #{tpu_custom_call.1} parent=5 // pred_region
        %s238 = ssub.s32 %s17, 1
        %s239 = sand.u32 %s93, 1
        %s240 = scalar_lea.sflag [#allocation4], %s239
        %s241 = sand.u32 %s93, 1
        %s242 = smul.addr %s241, 512
        %s243 = scalar_lea.vmem [#allocation3], %s242
        // Predicated region
        $region41: #{tpu_custom_call.1} parent=39 // pred_check
          %p244 = pneg %p106
        $region42: #{tpu_custom_call.1} parent=39 // pred_check_branch
          %246 = sbr.rel (%p244) target = $region44
        $region43: #{tpu_custom_call.1} parent=39 // pred_region
          %247 = dma.done %s240, 8192
        $region44: #{tpu_custom_call.1} parent=39 // pred_fallthru
          _
        %p248 = pneg %p38
        %p249 = pneg %p35
        %p250 = pneg %p59
        %p251 = pneg %p56
        %p252 = pneg %p80
        %p253 = pneg %p77
        %s254 = sand.u32 %s93, 1
        %s255 = scalar_lea.sflag [#allocation4], %s254
        %s256 = sand.u32 %s93, 1
        %s257 = smul.addr %s256, 512
        %s258 = scalar_lea.vmem [#allocation3], %s257
        %p259 = pneg %p106
        %p260 = pneg %p103
        %s261 = smul.u32 64, %s22
        %p262 = scmp.lt.s32.totalorder %s261, 255
        %s263 = scalar_select %p262, %s261, 255
        %s264 = smul.addr %s263, 4
        %s265 = scalar_lea.vmem %s4, %s264
        %p266 = pneg %p132
        %p267 = pneg %p129
        %p268 = pneg %p153
        %p269 = pneg %p150
        %p270 = pneg %p174
        %p271 = pneg %p171
        %s272 = smul.u32 4, %s22
        %s273 = smul.u32 64, %s22
        %p274 = scmp.lt.s32.totalorder %s273, 255
        %s275 = scalar_select %p274, %s273, 255
        %s276 = smul.addr %s275, 4
        %s277 = scalar_lea.vmem %s4, %s276
        %s278 = smul.u32 64, %s22
        %p280 = scmp.eq.s32.totalorder %s22, 0
        // Predicated region
        $region45: #{tpu_custom_call.1} parent=39 // pred_check
          %p281 = pneg %p280
        $region46: #{tpu_custom_call.1} parent=39 // pred_check_branch
          %283 = sbr.rel (%p281) target = $region48
        $region47: #{tpu_custom_call.1} parent=39 // pred_region
          %vm284 = vcmask 326656
          %285 = vst.msk [vmem:[#allocation2] sm:$0xff] %vm284, 0.0
          %286 = vst.msk [vmem:[#allocation2 + $0x8] sm:$0xff] %vm284, 0.0
          %287 = vst.msk [vmem:[#allocation2 + $0x10] sm:$0xff] %vm284, 0.0
          %288 = vst.msk [vmem:[#allocation2 + $0x18] sm:$0xff] %vm284, 0.0
          %289 = vst.msk [vmem:[#allocation2 + $0x20] sm:$0xff] %vm284, 0.0
          %290 = vst.msk [vmem:[#allocation2 + $0x28] sm:$0xff] %vm284, 0.0
          %291 = vst.msk [vmem:[#allocation2 + $0x30] sm:$0xff] %vm284, 0.0
          %292 = vst.msk [vmem:[#allocation2 + $0x38] sm:$0xff] %vm284, 0.0
          %293 = vst.msk [vmem:[#allocation2 + $0x40] sm:$0xff] %vm284, 0.0
          %294 = vst.msk [vmem:[#allocation2 + $0x48] sm:$0xff] %vm284, 0.0
          %295 = vst.msk [vmem:[#allocation2 + $0x50] sm:$0xff] %vm284, 0.0
          %296 = vst.msk [vmem:[#allocation2 + $0x58] sm:$0xff] %vm284, 0.0
          %297 = vst.msk [vmem:[#allocation2 + $0x60] sm:$0xff] %vm284, 0.0
          %298 = vst.msk [vmem:[#allocation2 + $0x68] sm:$0xff] %vm284, 0.0
          %299 = vst.msk [vmem:[#allocation2 + $0x70] sm:$0xff] %vm284, 0.0
          %300 = vst.msk [vmem:[#allocation2 + $0x78] sm:$0xff] %vm284, 0.0
          %301 = vst.msk [vmem:[#allocation2 + $0x80] sm:$0xff] %vm284, 0.0
          %302 = vst.msk [vmem:[#allocation2 + $0x88] sm:$0xff] %vm284, 0.0
          %303 = vst.msk [vmem:[#allocation2 + $0x90] sm:$0xff] %vm284, 0.0
          %304 = vst.msk [vmem:[#allocation2 + $0x98] sm:$0xff] %vm284, 0.0
          %305 = vst.msk [vmem:[#allocation2 + $0xa0] sm:$0xff] %vm284, 0.0
          %306 = vst.msk [vmem:[#allocation2 + $0xa8] sm:$0xff] %vm284, 0.0
          %307 = vst.msk [vmem:[#allocation2 + $0xb0] sm:$0xff] %vm284, 0.0
          %308 = vst.msk [vmem:[#allocation2 + $0xb8] sm:$0xff] %vm284, 0.0
          %309 = vst.msk [vmem:[#allocation2 + $0xc0] sm:$0xff] %vm284, 0.0
          %310 = vst.msk [vmem:[#allocation2 + $0xc8] sm:$0xff] %vm284, 0.0
          %311 = vst.msk [vmem:[#allocation2 + $0xd0] sm:$0xff] %vm284, 0.0
          %312 = vst.msk [vmem:[#allocation2 + $0xd8] sm:$0xff] %vm284, 0.0
          %313 = vst.msk [vmem:[#allocation2 + $0xe0] sm:$0xff] %vm284, 0.0
          %314 = vst.msk [vmem:[#allocation2 + $0xe8] sm:$0xff] %vm284, 0.0
          %315 = vst.msk [vmem:[#allocation2 + $0xf0] sm:$0xff] %vm284, 0.0
          %316 = vst.msk [vmem:[#allocation2 + $0xf8] sm:$0xff] %vm284, 0.0
        $region48: #{tpu_custom_call.1} parent=39 // pred_fallthru
          _
        %v317 = vld [vmem:[#allocation2] sm:$0xff]
        %v318 = vld [vmem:[#allocation2 + $0x8] sm:$0xff]
        %v319 = vld [vmem:[#allocation2 + $0x10] sm:$0xff]
        %v320 = vld [vmem:[#allocation2 + $0x18] sm:$0xff]
        %v321 = vld [vmem:[#allocation2 + $0x20] sm:$0xff]
        %v322 = vld [vmem:[#allocation2 + $0x28] sm:$0xff]
        %v323 = vld [vmem:[#allocation2 + $0x30] sm:$0xff]
        %v324 = vld [vmem:[#allocation2 + $0x38] sm:$0xff]
        %v325 = vld [vmem:[#allocation2 + $0x40] sm:$0xff]
        %v326 = vld [vmem:[#allocation2 + $0x48] sm:$0xff]
        %v327 = vld [vmem:[#allocation2 + $0x50] sm:$0xff]
        %v328 = vld [vmem:[#allocation2 + $0x58] sm:$0xff]
        %v329 = vld [vmem:[#allocation2 + $0x60] sm:$0xff]
        %v330 = vld [vmem:[#allocation2 + $0x68] sm:$0xff]
        %v331 = vld [vmem:[#allocation2 + $0x70] sm:$0xff]
        %v332 = vld [vmem:[#allocation2 + $0x78] sm:$0xff]
        %v333 = vld [vmem:[#allocation2 + $0x80] sm:$0xff]
        %v334 = vld [vmem:[#allocation2 + $0x88] sm:$0xff]
        %v335 = vld [vmem:[#allocation2 + $0x90] sm:$0xff]
        %v336 = vld [vmem:[#allocation2 + $0x98] sm:$0xff]
        %v337 = vld [vmem:[#allocation2 + $0xa0] sm:$0xff]
        %v338 = vld [vmem:[#allocation2 + $0xa8] sm:$0xff]
        %v339 = vld [vmem:[#allocation2 + $0xb0] sm:$0xff]
        %v340 = vld [vmem:[#allocation2 + $0xb8] sm:$0xff]
        %v341 = vld [vmem:[#allocation2 + $0xc0] sm:$0xff]
        %v342 = vld [vmem:[#allocation2 + $0xc8] sm:$0xff]
        %v343 = vld [vmem:[#allocation2 + $0xd0] sm:$0xff]
        %v344 = vld [vmem:[#allocation2 + $0xd8] sm:$0xff]
        %v345 = vld [vmem:[#allocation2 + $0xe0] sm:$0xff]
        %v346 = vld [vmem:[#allocation2 + $0xe8] sm:$0xff]
        %v347 = vld [vmem:[#allocation2 + $0xf0] sm:$0xff]
        %v348 = vld [vmem:[#allocation2 + $0xf8] sm:$0xff]
        %v349 = vld [vmem:[%s243] sm:$0xff]
        %v350 = vld [vmem:[%s243 + $0x8] sm:$0xff]
        %v351 = vld [vmem:[%s243 + $0x10] sm:$0xff]
        %v352 = vld [vmem:[%s243 + $0x18] sm:$0xff]
        %v353 = vld [vmem:[%s243 + $0x20] sm:$0xff]
        %v354 = vld [vmem:[%s243 + $0x28] sm:$0xff]
        %v355 = vld [vmem:[%s243 + $0x30] sm:$0xff]
        %v356 = vld [vmem:[%s243 + $0x38] sm:$0xff]
        %v357 = vld [vmem:[%s243 + $0x40] sm:$0xff]
        %v358 = vld [vmem:[%s243 + $0x48] sm:$0xff]
        %v359 = vld [vmem:[%s243 + $0x50] sm:$0xff]
        %v360 = vld [vmem:[%s243 + $0x58] sm:$0xff]
        %v361 = vld [vmem:[%s243 + $0x60] sm:$0xff]
        %v362 = vld [vmem:[%s243 + $0x68] sm:$0xff]
        %v363 = vld [vmem:[%s243 + $0x70] sm:$0xff]
        %v364 = vld [vmem:[%s243 + $0x78] sm:$0xff]
        %v365 = vld [vmem:[%s243 + $0x80] sm:$0xff]
        %v366 = vld [vmem:[%s243 + $0x88] sm:$0xff]
        %v367 = vld [vmem:[%s243 + $0x90] sm:$0xff]
        %v368 = vld [vmem:[%s243 + $0x98] sm:$0xff]
        %v369 = vld [vmem:[%s243 + $0xa0] sm:$0xff]
        %v370 = vld [vmem:[%s243 + $0xa8] sm:$0xff]
        %v371 = vld [vmem:[%s243 + $0xb0] sm:$0xff]
        %v372 = vld [vmem:[%s243 + $0xb8] sm:$0xff]
        %v373 = vld [vmem:[%s243 + $0xc0] sm:$0xff]
        %v374 = vld [vmem:[%s243 + $0xc8] sm:$0xff]
        %v375 = vld [vmem:[%s243 + $0xd0] sm:$0xff]
        %v376 = vld [vmem:[%s243 + $0xd8] sm:$0xff]
        %v377 = vld [vmem:[%s243 + $0xe0] sm:$0xff]
        %v378 = vld [vmem:[%s243 + $0xe8] sm:$0xff]
        %v379 = vld [vmem:[%s243 + $0xf0] sm:$0xff]
        %v380 = vld [vmem:[%s243 + $0xf8] sm:$0xff]
        %v381 = vld [vmem:[%s243 + $0x100] sm:$0xff]
        %v382 = vld [vmem:[%s243 + $0x108] sm:$0xff]
        %v383 = vld [vmem:[%s243 + $0x110] sm:$0xff]
        %v384 = vld [vmem:[%s243 + $0x118] sm:$0xff]
        %v385 = vld [vmem:[%s243 + $0x120] sm:$0xff]
        %v386 = vld [vmem:[%s243 + $0x128] sm:$0xff]
        %v387 = vld [vmem:[%s243 + $0x130] sm:$0xff]
        %v388 = vld [vmem:[%s243 + $0x138] sm:$0xff]
        %v389 = vld [vmem:[%s243 + $0x140] sm:$0xff]
        %v390 = vld [vmem:[%s243 + $0x148] sm:$0xff]
        %v391 = vld [vmem:[%s243 + $0x150] sm:$0xff]
        %v392 = vld [vmem:[%s243 + $0x158] sm:$0xff]
        %v393 = vld [vmem:[%s243 + $0x160] sm:$0xff]
        %v394 = vld [vmem:[%s243 + $0x168] sm:$0xff]
        %v395 = vld [vmem:[%s243 + $0x170] sm:$0xff]
        %v396 = vld [vmem:[%s243 + $0x178] sm:$0xff]
        %v397 = vld [vmem:[%s243 + $0x180] sm:$0xff]
        %v398 = vld [vmem:[%s243 + $0x188] sm:$0xff]
        %v399 = vld [vmem:[%s243 + $0x190] sm:$0xff]
        %v400 = vld [vmem:[%s243 + $0x198] sm:$0xff]
        %v401 = vld [vmem:[%s243 + $0x1a0] sm:$0xff]
        %v402 = vld [vmem:[%s243 + $0x1a8] sm:$0xff]
        %v403 = vld [vmem:[%s243 + $0x1b0] sm:$0xff]
        %v404 = vld [vmem:[%s243 + $0x1b8] sm:$0xff]
        %v405 = vld [vmem:[%s243 + $0x1c0] sm:$0xff]
        %v406 = vld [vmem:[%s243 + $0x1c8] sm:$0xff]
        %v407 = vld [vmem:[%s243 + $0x1d0] sm:$0xff]
        %v408 = vld [vmem:[%s243 + $0x1d8] sm:$0xff]
        %v409 = vld [vmem:[%s243 + $0x1e0] sm:$0xff]
        %v410 = vld [vmem:[%s243 + $0x1e8] sm:$0xff]
        %v411 = vld [vmem:[%s243 + $0x1f0] sm:$0xff]
        %v412 = vld [vmem:[%s243 + $0x1f8] sm:$0xff]
        %v413 = vld [vmem:[%s277] sm:$0xf]
        %v414 = vld [vmem:[%s277 + $0x4] sm:$0xf]
        %v415 = vld [vmem:[%s277 + $0x8] sm:$0xf]
        %v416 = vld [vmem:[%s277 + $0xc] sm:$0xf]
        %v417 = vld [vmem:[%s277 + $0x10] sm:$0xf]
        %v418 = vld [vmem:[%s277 + $0x14] sm:$0xf]
        %v419 = vld [vmem:[%s277 + $0x18] sm:$0xf]
        %v420 = vld [vmem:[%s277 + $0x1c] sm:$0xf]
        %v421 = vld [vmem:[%s277 + $0x20] sm:$0xf]
        %v422 = vld [vmem:[%s277 + $0x24] sm:$0xf]
        %v423 = vld [vmem:[%s277 + $0x28] sm:$0xf]
        %v424 = vld [vmem:[%s277 + $0x2c] sm:$0xf]
        %v425 = vld [vmem:[%s277 + $0x30] sm:$0xf]
        %v426 = vld [vmem:[%s277 + $0x34] sm:$0xf]
        %v427 = vld [vmem:[%s277 + $0x38] sm:$0xf]
        %v428 = vld [vmem:[%s277 + $0x3c] sm:$0xf]
        %v429 = vld [vmem:[%s277 + $0x40] sm:$0xf]
        %v430 = vld [vmem:[%s277 + $0x44] sm:$0xf]
        %v431 = vld [vmem:[%s277 + $0x48] sm:$0xf]
        %v432 = vld [vmem:[%s277 + $0x4c] sm:$0xf]
        %v433 = vld [vmem:[%s277 + $0x50] sm:$0xf]
        %v434 = vld [vmem:[%s277 + $0x54] sm:$0xf]
        %v435 = vld [vmem:[%s277 + $0x58] sm:$0xf]
        %v436 = vld [vmem:[%s277 + $0x5c] sm:$0xf]
        %v437 = vld [vmem:[%s277 + $0x60] sm:$0xf]
        %v438 = vld [vmem:[%s277 + $0x64] sm:$0xf]
        %v439 = vld [vmem:[%s277 + $0x68] sm:$0xf]
        %v440 = vld [vmem:[%s277 + $0x6c] sm:$0xf]
        %v441 = vld [vmem:[%s277 + $0x70] sm:$0xf]
        %v442 = vld [vmem:[%s277 + $0x74] sm:$0xf]
        %v443 = vld [vmem:[%s277 + $0x78] sm:$0xf]
        %v444 = vld [vmem:[%s277 + $0x7c] sm:$0xf]
        %v445 = vld [vmem:[%s277 + $0x80] sm:$0xf]
        %v446 = vld [vmem:[%s277 + $0x84] sm:$0xf]
        %v447 = vld [vmem:[%s277 + $0x88] sm:$0xf]
        %v448 = vld [vmem:[%s277 + $0x8c] sm:$0xf]
        %v449 = vld [vmem:[%s277 + $0x90] sm:$0xf]
        %v450 = vld [vmem:[%s277 + $0x94] sm:$0xf]
        %v451 = vld [vmem:[%s277 + $0x98] sm:$0xf]
        %v452 = vld [vmem:[%s277 + $0x9c] sm:$0xf]
        %v453 = vld [vmem:[%s277 + $0xa0] sm:$0xf]
        %v454 = vld [vmem:[%s277 + $0xa4] sm:$0xf]
        %v455 = vld [vmem:[%s277 + $0xa8] sm:$0xf]
        %v456 = vld [vmem:[%s277 + $0xac] sm:$0xf]
        %v457 = vld [vmem:[%s277 + $0xb0] sm:$0xf]
        %v458 = vld [vmem:[%s277 + $0xb4] sm:$0xf]
        %v459 = vld [vmem:[%s277 + $0xb8] sm:$0xf]
        %v460 = vld [vmem:[%s277 + $0xbc] sm:$0xf]
        %v461 = vld [vmem:[%s277 + $0xc0] sm:$0xf]
        %v462 = vld [vmem:[%s277 + $0xc4] sm:$0xf]
        %v463 = vld [vmem:[%s277 + $0xc8] sm:$0xf]
        %v464 = vld [vmem:[%s277 + $0xcc] sm:$0xf]
        %v465 = vld [vmem:[%s277 + $0xd0] sm:$0xf]
        %v466 = vld [vmem:[%s277 + $0xd4] sm:$0xf]
        %v467 = vld [vmem:[%s277 + $0xd8] sm:$0xf]
        %v468 = vld [vmem:[%s277 + $0xdc] sm:$0xf]
        %v469 = vld [vmem:[%s277 + $0xe0] sm:$0xf]
        %v470 = vld [vmem:[%s277 + $0xe4] sm:$0xf]
        %v471 = vld [vmem:[%s277 + $0xe8] sm:$0xf]
        %v472 = vld [vmem:[%s277 + $0xec] sm:$0xf]
        %v473 = vld [vmem:[%s277 + $0xf0] sm:$0xf]
        %v474 = vld [vmem:[%s277 + $0xf4] sm:$0xf]
        %v475 = vld [vmem:[%s277 + $0xf8] sm:$0xf]
        %v476 = vld [vmem:[%s277 + $0xfc] sm:$0xf]
        %v541 = vunpack.c.l.b16 %v349
        %v542 = vunpack.c.h.b16 %v349
        %v543 = vunpack.c.l.b16 %v350
        %v544 = vunpack.c.h.b16 %v350
        %v545 = vunpack.c.l.b16 %v351
        %v546 = vunpack.c.h.b16 %v351
        %v547 = vunpack.c.l.b16 %v352
        %v548 = vunpack.c.h.b16 %v352
        %v549 = vunpack.c.l.b16 %v353
        %v550 = vunpack.c.h.b16 %v353
        %v551 = vunpack.c.l.b16 %v354
        %v552 = vunpack.c.h.b16 %v354
        %v553 = vunpack.c.l.b16 %v355
        %v554 = vunpack.c.h.b16 %v355
        %v555 = vunpack.c.l.b16 %v356
        %v556 = vunpack.c.h.b16 %v356
        %v557 = vunpack.c.l.b16 %v357
        %v558 = vunpack.c.h.b16 %v357
        %v559 = vunpack.c.l.b16 %v358
        %v560 = vunpack.c.h.b16 %v358
        %v561 = vunpack.c.l.b16 %v359
        %v562 = vunpack.c.h.b16 %v359
        %v563 = vunpack.c.l.b16 %v360
        %v564 = vunpack.c.h.b16 %v360
        %v565 = vunpack.c.l.b16 %v361
        %v566 = vunpack.c.h.b16 %v361
        %v567 = vunpack.c.l.b16 %v362
        %v568 = vunpack.c.h.b16 %v362
        %v569 = vunpack.c.l.b16 %v363
        %v570 = vunpack.c.h.b16 %v363
        %v571 = vunpack.c.l.b16 %v364
        %v572 = vunpack.c.h.b16 %v364
        %v573 = vunpack.c.l.b16 %v365
        %v574 = vunpack.c.h.b16 %v365
        %v575 = vunpack.c.l.b16 %v366
        %v576 = vunpack.c.h.b16 %v366
        %v577 = vunpack.c.l.b16 %v367
        %v578 = vunpack.c.h.b16 %v367
        %v579 = vunpack.c.l.b16 %v368
        %v580 = vunpack.c.h.b16 %v368
        %v581 = vunpack.c.l.b16 %v369
        %v582 = vunpack.c.h.b16 %v369
        %v583 = vunpack.c.l.b16 %v370
        %v584 = vunpack.c.h.b16 %v370
        %v585 = vunpack.c.l.b16 %v371
        %v586 = vunpack.c.h.b16 %v371
        %v587 = vunpack.c.l.b16 %v372
        %v588 = vunpack.c.h.b16 %v372
        %v589 = vunpack.c.l.b16 %v373
        %v590 = vunpack.c.h.b16 %v373
        %v591 = vunpack.c.l.b16 %v374
        %v592 = vunpack.c.h.b16 %v374
        %v593 = vunpack.c.l.b16 %v375
        %v594 = vunpack.c.h.b16 %v375
        %v595 = vunpack.c.l.b16 %v376
        %v596 = vunpack.c.h.b16 %v376
        %v597 = vunpack.c.l.b16 %v377
        %v598 = vunpack.c.h.b16 %v377
        %v599 = vunpack.c.l.b16 %v378
        %v600 = vunpack.c.h.b16 %v378
        %v601 = vunpack.c.l.b16 %v379
        %v602 = vunpack.c.h.b16 %v379
        %v603 = vunpack.c.l.b16 %v380
        %v604 = vunpack.c.h.b16 %v380
        %v605 = vunpack.c.l.b16 %v381
        %v606 = vunpack.c.h.b16 %v381
        %v607 = vunpack.c.l.b16 %v382
        %v608 = vunpack.c.h.b16 %v382
        %v609 = vunpack.c.l.b16 %v383
        %v610 = vunpack.c.h.b16 %v383
        %v611 = vunpack.c.l.b16 %v384
        %v612 = vunpack.c.h.b16 %v384
        %v613 = vunpack.c.l.b16 %v385
        %v614 = vunpack.c.h.b16 %v385
        %v615 = vunpack.c.l.b16 %v386
        %v616 = vunpack.c.h.b16 %v386
        %v617 = vunpack.c.l.b16 %v387
        %v618 = vunpack.c.h.b16 %v387
        %v619 = vunpack.c.l.b16 %v388
        %v620 = vunpack.c.h.b16 %v388
        %v621 = vunpack.c.l.b16 %v389
        %v622 = vunpack.c.h.b16 %v389
        %v623 = vunpack.c.l.b16 %v390
        %v624 = vunpack.c.h.b16 %v390
        %v625 = vunpack.c.l.b16 %v391
        %v626 = vunpack.c.h.b16 %v391
        %v627 = vunpack.c.l.b16 %v392
        %v628 = vunpack.c.h.b16 %v392
        %v629 = vunpack.c.l.b16 %v393
        %v630 = vunpack.c.h.b16 %v393
        %v631 = vunpack.c.l.b16 %v394
        %v632 = vunpack.c.h.b16 %v394
        %v633 = vunpack.c.l.b16 %v395
        %v634 = vunpack.c.h.b16 %v395
        %v635 = vunpack.c.l.b16 %v396
        %v636 = vunpack.c.h.b16 %v396
        %v637 = vunpack.c.l.b16 %v397
        %v638 = vunpack.c.h.b16 %v397
        %v639 = vunpack.c.l.b16 %v398
        %v640 = vunpack.c.h.b16 %v398
        %v641 = vunpack.c.l.b16 %v399
        %v642 = vunpack.c.h.b16 %v399
        %v643 = vunpack.c.l.b16 %v400
        %v644 = vunpack.c.h.b16 %v400
        %v645 = vunpack.c.l.b16 %v401
        %v646 = vunpack.c.h.b16 %v401
        %v647 = vunpack.c.l.b16 %v402
        %v648 = vunpack.c.h.b16 %v402
        %v649 = vunpack.c.l.b16 %v403
        %v650 = vunpack.c.h.b16 %v403
        %v651 = vunpack.c.l.b16 %v404
        %v652 = vunpack.c.h.b16 %v404
        %v653 = vunpack.c.l.b16 %v405
        %v654 = vunpack.c.h.b16 %v405
        %v655 = vunpack.c.l.b16 %v406
        %v656 = vunpack.c.h.b16 %v406
        %v657 = vunpack.c.l.b16 %v407
        %v658 = vunpack.c.h.b16 %v407
        %v659 = vunpack.c.l.b16 %v408
        %v660 = vunpack.c.h.b16 %v408
        %v661 = vunpack.c.l.b16 %v409
        %v662 = vunpack.c.h.b16 %v409
        %v663 = vunpack.c.l.b16 %v410
        %v664 = vunpack.c.h.b16 %v410
        %v665 = vunpack.c.l.b16 %v411
        %v666 = vunpack.c.h.b16 %v411
        %v667 = vunpack.c.l.b16 %v412
        %v668 = vunpack.c.h.b16 %v412
        %v669 = vpack.c.b16 %v545, %v541
        %v670 = vpack.c.b16 %v546, %v542
        %v671 = vpack.c.b16 %v547, %v543
        %v672 = vpack.c.b16 %v548, %v544
        %v673 = vpack.c.b16 %v553, %v549
        %v674 = vpack.c.b16 %v554, %v550
        %v675 = vpack.c.b16 %v555, %v551
        %v676 = vpack.c.b16 %v556, %v552
        %v677 = vpack.c.b16 %v561, %v557
        %v678 = vpack.c.b16 %v562, %v558
        %v679 = vpack.c.b16 %v563, %v559
        %v680 = vpack.c.b16 %v564, %v560
        %v681 = vpack.c.b16 %v569, %v565
        %v682 = vpack.c.b16 %v570, %v566
        %v683 = vpack.c.b16 %v571, %v567
        %v684 = vpack.c.b16 %v572, %v568
        %v685 = vpack.c.b16 %v577, %v573
        %v686 = vpack.c.b16 %v578, %v574
        %v687 = vpack.c.b16 %v579, %v575
        %v688 = vpack.c.b16 %v580, %v576
        %v689 = vpack.c.b16 %v585, %v581
        %v690 = vpack.c.b16 %v586, %v582
        %v691 = vpack.c.b16 %v587, %v583
        %v692 = vpack.c.b16 %v588, %v584
        %v693 = vpack.c.b16 %v593, %v589
        %v694 = vpack.c.b16 %v594, %v590
        %v695 = vpack.c.b16 %v595, %v591
        %v696 = vpack.c.b16 %v596, %v592
        %v697 = vpack.c.b16 %v601, %v597
        %v698 = vpack.c.b16 %v602, %v598
        %v699 = vpack.c.b16 %v603, %v599
        %v700 = vpack.c.b16 %v604, %v600
        %v701 = vpack.c.b16 %v609, %v605
        %v702 = vpack.c.b16 %v610, %v606
        %v703 = vpack.c.b16 %v611, %v607
        %v704 = vpack.c.b16 %v612, %v608
        %v705 = vpack.c.b16 %v617, %v613
        %v706 = vpack.c.b16 %v618, %v614
        %v707 = vpack.c.b16 %v619, %v615
        %v708 = vpack.c.b16 %v620, %v616
        %v709 = vpack.c.b16 %v625, %v621
        %v710 = vpack.c.b16 %v626, %v622
        %v711 = vpack.c.b16 %v627, %v623
        %v712 = vpack.c.b16 %v628, %v624
        %v713 = vpack.c.b16 %v633, %v629
        %v714 = vpack.c.b16 %v634, %v630
        %v715 = vpack.c.b16 %v635, %v631
        %v716 = vpack.c.b16 %v636, %v632
        %v717 = vpack.c.b16 %v641, %v637
        %v718 = vpack.c.b16 %v642, %v638
        %v719 = vpack.c.b16 %v643, %v639
        %v720 = vpack.c.b16 %v644, %v640
        %v721 = vpack.c.b16 %v649, %v645
        %v722 = vpack.c.b16 %v650, %v646
        %v723 = vpack.c.b16 %v651, %v647
        %v724 = vpack.c.b16 %v652, %v648
        %v725 = vpack.c.b16 %v657, %v653
        %v726 = vpack.c.b16 %v658, %v654
        %v727 = vpack.c.b16 %v659, %v655
        %v728 = vpack.c.b16 %v660, %v656
        %v729 = vpack.c.b16 %v665, %v661
        %v730 = vpack.c.b16 %v666, %v662
        %v731 = vpack.c.b16 %v667, %v663
        %v732 = vpack.c.b16 %v668, %v664
        %v861 = vunpack.c.l.b16 %v413
        %v862 = vunpack.c.l.b16 %v414
        %v863 = vunpack.c.l.b16 %v415
        %v864 = vunpack.c.l.b16 %v416
        %v865 = vunpack.c.l.b16 %v417
        %v866 = vunpack.c.l.b16 %v418
        %v867 = vunpack.c.l.b16 %v419
        %v868 = vunpack.c.l.b16 %v420
        %v869 = vunpack.c.l.b16 %v421
        %v870 = vunpack.c.l.b16 %v422
        %v871 = vunpack.c.l.b16 %v423
        %v872 = vunpack.c.l.b16 %v424
        %v873 = vunpack.c.l.b16 %v425
        %v874 = vunpack.c.l.b16 %v426
        %v875 = vunpack.c.l.b16 %v427
        %v876 = vunpack.c.l.b16 %v428
        %v877 = vunpack.c.l.b16 %v429
        %v878 = vunpack.c.l.b16 %v430
        %v879 = vunpack.c.l.b16 %v431
        %v880 = vunpack.c.l.b16 %v432
        %v881 = vunpack.c.l.b16 %v433
        %v882 = vunpack.c.l.b16 %v434
        %v883 = vunpack.c.l.b16 %v435
        %v884 = vunpack.c.l.b16 %v436
        %v885 = vunpack.c.l.b16 %v437
        %v886 = vunpack.c.l.b16 %v438
        %v887 = vunpack.c.l.b16 %v439
        %v888 = vunpack.c.l.b16 %v440
        %v889 = vunpack.c.l.b16 %v441
        %v890 = vunpack.c.l.b16 %v442
        %v891 = vunpack.c.l.b16 %v443
        %v892 = vunpack.c.l.b16 %v444
        %v893 = vunpack.c.l.b16 %v445
        %v894 = vunpack.c.l.b16 %v446
        %v895 = vunpack.c.l.b16 %v447
        %v896 = vunpack.c.l.b16 %v448
        %v897 = vunpack.c.l.b16 %v449
        %v898 = vunpack.c.l.b16 %v450
        %v899 = vunpack.c.l.b16 %v451
        %v900 = vunpack.c.l.b16 %v452
        %v901 = vunpack.c.l.b16 %v453
        %v902 = vunpack.c.l.b16 %v454
        %v903 = vunpack.c.l.b16 %v455
        %v904 = vunpack.c.l.b16 %v456
        %v905 = vunpack.c.l.b16 %v457
        %v906 = vunpack.c.l.b16 %v458
        %v907 = vunpack.c.l.b16 %v459
        %v908 = vunpack.c.l.b16 %v460
        %v909 = vunpack.c.l.b16 %v461
        %v910 = vunpack.c.l.b16 %v462
        %v911 = vunpack.c.l.b16 %v463
        %v912 = vunpack.c.l.b16 %v464
        %v913 = vunpack.c.l.b16 %v465
        %v914 = vunpack.c.l.b16 %v466
        %v915 = vunpack.c.l.b16 %v467
        %v916 = vunpack.c.l.b16 %v468
        %v917 = vunpack.c.l.b16 %v469
        %v918 = vunpack.c.l.b16 %v470
        %v919 = vunpack.c.l.b16 %v471
        %v920 = vunpack.c.l.b16 %v472
        %v921 = vunpack.c.l.b16 %v473
        %v922 = vunpack.c.l.b16 %v474
        %v923 = vunpack.c.l.b16 %v475
        %v924 = vunpack.c.l.b16 %v476
        %v925 = vpack.c.b16 %v862, %v861
        %v926 = vpack.c.b16 %v864, %v863
        %v927 = vpack.c.b16 %v866, %v865
        %v928 = vpack.c.b16 %v868, %v867
        %v929 = vpack.c.b16 %v870, %v869
        %v930 = vpack.c.b16 %v872, %v871
        %v931 = vpack.c.b16 %v874, %v873
        %v932 = vpack.c.b16 %v876, %v875
        %v933 = vpack.c.b16 %v878, %v877
        %v934 = vpack.c.b16 %v880, %v879
        %v935 = vpack.c.b16 %v882, %v881
        %v936 = vpack.c.b16 %v884, %v883
        %v937 = vpack.c.b16 %v886, %v885
        %v938 = vpack.c.b16 %v888, %v887
        %v939 = vpack.c.b16 %v890, %v889
        %v940 = vpack.c.b16 %v892, %v891
        %v941 = vpack.c.b16 %v894, %v893
        %v942 = vpack.c.b16 %v896, %v895
        %v943 = vpack.c.b16 %v898, %v897
        %v944 = vpack.c.b16 %v900, %v899
        %v945 = vpack.c.b16 %v902, %v901
        %v946 = vpack.c.b16 %v904, %v903
        %v947 = vpack.c.b16 %v906, %v905
        %v948 = vpack.c.b16 %v908, %v907
        %v949 = vpack.c.b16 %v910, %v909
        %v950 = vpack.c.b16 %v912, %v911
        %v951 = vpack.c.b16 %v914, %v913
        %v952 = vpack.c.b16 %v916, %v915
        %v953 = vpack.c.b16 %v918, %v917
        %v954 = vpack.c.b16 %v920, %v919
        %v955 = vpack.c.b16 %v922, %v921
        %v956 = vpack.c.b16 %v924, %v923
        %989 = vmatprep.subr.bf16.mxu0 0
        %990 = vmatpush1.bf16.msra.mxu0 %v932
        %991 = vmatprep.subr.bf16.mxu0 0
        %992 = vmatpush1.bf16.msra.mxu0 %v931
        %993 = vmatprep.subr.bf16.mxu0 0
        %994 = vmatpush1.bf16.msra.mxu0 %v930
        %995 = vmatprep.subr.bf16.mxu0 0
        %996 = vmatpush1.bf16.msra.mxu0 %v929
        %997 = vmatprep.subr.bf16.mxu0 0
        %998 = vmatpush1.bf16.msra.mxu0 %v928
        %999 = vmatprep.subr.bf16.mxu0 0
        %1000 = vmatpush1.bf16.msra.mxu0 %v927
        %1001 = vmatprep.subr.bf16.mxu0 0
        %1002 = vmatpush1.bf16.msra.mxu0 %v926
        %1003 = vmatprep.subr.bf16.mxu0 0
        %1004 = vmatpush1.bf16.msra.mxu0 %v925
        %1005 = vmatprep.subr.bf16.mxu0 0
        %1006 = vmatpush2.bf16.msra.mxu0 %v940
        %1007 = vmatprep.subr.bf16.mxu0 0
        %1008 = vmatpush2.bf16.msra.mxu0 %v939
        %1009 = vmatprep.subr.bf16.mxu0 0
        %1010 = vmatpush2.bf16.msra.mxu0 %v938
        %1011 = vmatprep.subr.bf16.mxu0 0
        %1012 = vmatpush2.bf16.msra.mxu0 %v937
        %1013 = vmatprep.subr.bf16.mxu0 0
        %1014 = vmatpush2.bf16.msra.mxu0 %v936
        %1015 = vmatprep.subr.bf16.mxu0 0
        %1016 = vmatpush2.bf16.msra.mxu0 %v935
        %1017 = vmatprep.subr.bf16.mxu0 0
        %1018 = vmatpush2.bf16.msra.mxu0 %v934
        %1019 = vmatprep.subr.bf16.mxu0 0
        %1020 = vmatpush2.bf16.msra.mxu0 %v933
        %1021 = vmatprep.mubr.bf16.mxu0 %v670
        %1022 = vmatmul.mubr.bf16.gmra.mxu0 %v669
        %v1023 = vpop.f32.mrf.mxu0
        %v1024 = vadd.f32 0.0, %v1023
        %v1025 = vpop.f32.mrf.mxu0
        %v1026 = vpop.f32.mrf.mxu0
        %v1027 = vadd.f32 0.0, %v1026
        %v1028 = vpop.f32.mrf.mxu0
        %1029 = vmatprep.mubr.bf16.mxu0 %v674
        %1030 = vmatmul.mubr.bf16.gmra.mxu0 %v673
        %v1031 = vpop.f32.mrf.mxu0
        %v1032 = vadd.f32 0.0, %v1031
        %v1033 = vpop.f32.mrf.mxu0
        %v1034 = vpop.f32.mrf.mxu0
        %v1035 = vadd.f32 0.0, %v1034
        %v1036 = vpop.f32.mrf.mxu0
        %1037 = vmatprep.mubr.bf16.mxu0 %v678
        %1038 = vmatmul.mubr.bf16.gmra.mxu0 %v677
        %v1039 = vpop.f32.mrf.mxu0
        %v1040 = vadd.f32 0.0, %v1039
        %v1041 = vpop.f32.mrf.mxu0
        %v1042 = vpop.f32.mrf.mxu0
        %v1043 = vadd.f32 0.0, %v1042
        %v1044 = vpop.f32.mrf.mxu0
        %1045 = vmatprep.mubr.bf16.mxu0 %v682
        %1046 = vmatmul.mubr.bf16.gmra.mxu0 %v681
        %v1047 = vpop.f32.mrf.mxu0
        %v1048 = vadd.f32 0.0, %v1047
        %v1049 = vpop.f32.mrf.mxu0
        %v1050 = vpop.f32.mrf.mxu0
        %v1051 = vadd.f32 0.0, %v1050
        %v1052 = vpop.f32.mrf.mxu0
        %1053 = vmatprep.mubr.bf16.mxu0 %v686
        %1054 = vmatmul.mubr.bf16.gmra.mxu0 %v685
        %v1055 = vpop.f32.mrf.mxu0
        %v1056 = vadd.f32 0.0, %v1055
        %v1057 = vpop.f32.mrf.mxu0
        %v1058 = vpop.f32.mrf.mxu0
        %v1059 = vadd.f32 0.0, %v1058
        %v1060 = vpop.f32.mrf.mxu0
        %1061 = vmatprep.mubr.bf16.mxu0 %v690
        %1062 = vmatmul.mubr.bf16.gmra.mxu0 %v689
        %v1063 = vpop.f32.mrf.mxu0
        %v1064 = vadd.f32 0.0, %v1063
        %v1065 = vpop.f32.mrf.mxu0
        %v1066 = vpop.f32.mrf.mxu0
        %v1067 = vadd.f32 0.0, %v1066
        %v1068 = vpop.f32.mrf.mxu0
        %1069 = vmatprep.mubr.bf16.mxu0 %v694
        %1070 = vmatmul.mubr.bf16.gmra.mxu0 %v693
        %v1071 = vpop.f32.mrf.mxu0
        %v1072 = vadd.f32 0.0, %v1071
        %v1073 = vpop.f32.mrf.mxu0
        %v1074 = vpop.f32.mrf.mxu0
        %v1075 = vadd.f32 0.0, %v1074
        %v1076 = vpop.f32.mrf.mxu0
        %1077 = vmatprep.mubr.bf16.mxu0 %v698
        %1078 = vmatmul.mubr.bf16.gmra.mxu0 %v697
        %v1079 = vpop.f32.mrf.mxu0
        %v1080 = vadd.f32 0.0, %v1079
        %v1081 = vpop.f32.mrf.mxu0
        %v1082 = vpop.f32.mrf.mxu0
        %v1083 = vadd.f32 0.0, %v1082
        %v1084 = vpop.f32.mrf.mxu0
        %1085 = vmatprep.mubr.bf16.mxu0 %v702
        %1086 = vmatmul.mubr.bf16.gmra.mxu0 %v701
        %v1087 = vpop.f32.mrf.mxu0
        %v1088 = vadd.f32 0.0, %v1087
        %v1089 = vpop.f32.mrf.mxu0
        %v1090 = vpop.f32.mrf.mxu0
        %v1091 = vadd.f32 0.0, %v1090
        %v1092 = vpop.f32.mrf.mxu0
        %1093 = vmatprep.mubr.bf16.mxu0 %v706
        %1094 = vmatmul.mubr.bf16.gmra.mxu0 %v705
        %v1095 = vpop.f32.mrf.mxu0
        %v1096 = vadd.f32 0.0, %v1095
        %v1097 = vpop.f32.mrf.mxu0
        %v1098 = vpop.f32.mrf.mxu0
        %v1099 = vadd.f32 0.0, %v1098
        %v1100 = vpop.f32.mrf.mxu0
        %1101 = vmatprep.mubr.bf16.mxu0 %v710
        %1102 = vmatmul.mubr.bf16.gmra.mxu0 %v709
        %v1103 = vpop.f32.mrf.mxu0
        %v1104 = vadd.f32 0.0, %v1103
        %v1105 = vpop.f32.mrf.mxu0
        %v1106 = vpop.f32.mrf.mxu0
        %v1107 = vadd.f32 0.0, %v1106
        %v1108 = vpop.f32.mrf.mxu0
        %1109 = vmatprep.mubr.bf16.mxu0 %v714
        %1110 = vmatmul.mubr.bf16.gmra.mxu0 %v713
        %v1111 = vpop.f32.mrf.mxu0
        %v1112 = vadd.f32 0.0, %v1111
        %v1113 = vpop.f32.mrf.mxu0
        %v1114 = vpop.f32.mrf.mxu0
        %v1115 = vadd.f32 0.0, %v1114
        %v1116 = vpop.f32.mrf.mxu0
        %1117 = vmatprep.mubr.bf16.mxu0 %v718
        %1118 = vmatmul.mubr.bf16.gmra.mxu0 %v717
        %v1119 = vpop.f32.mrf.mxu0
        %v1120 = vadd.f32 0.0, %v1119
        %v1121 = vpop.f32.mrf.mxu0
        %v1122 = vpop.f32.mrf.mxu0
        %v1123 = vadd.f32 0.0, %v1122
        %v1124 = vpop.f32.mrf.mxu0
        %1125 = vmatprep.mubr.bf16.mxu0 %v722
        %1126 = vmatmul.mubr.bf16.gmra.mxu0 %v721
        %v1127 = vpop.f32.mrf.mxu0
        %v1128 = vadd.f32 0.0, %v1127
        %v1129 = vpop.f32.mrf.mxu0
        %v1130 = vpop.f32.mrf.mxu0
        %v1131 = vadd.f32 0.0, %v1130
        %v1132 = vpop.f32.mrf.mxu0
        %1133 = vmatprep.mubr.bf16.mxu0 %v726
        %1134 = vmatmul.mubr.bf16.gmra.mxu0 %v725
        %v1135 = vpop.f32.mrf.mxu0
        %v1136 = vadd.f32 0.0, %v1135
        %v1137 = vpop.f32.mrf.mxu0
        %v1138 = vpop.f32.mrf.mxu0
        %v1139 = vadd.f32 0.0, %v1138
        %v1140 = vpop.f32.mrf.mxu0
        %1141 = vmatprep.mubr.bf16.mxu0 %v730
        %1142 = vmatmul.mubr.bf16.gmra.mxu0 %v729
        %v1143 = vpop.f32.mrf.mxu0
        %v1144 = vadd.f32 0.0, %v1143
        %v1145 = vpop.f32.mrf.mxu0
        %v1146 = vpop.f32.mrf.mxu0
        %v1147 = vadd.f32 0.0, %v1146
        %v1148 = vpop.f32.mrf.mxu0
        %1149 = vdwg.mxu0
        %1150 = vmatprep.subr.bf16.mxu0 0
        %1151 = vmatpush1.bf16.msra.mxu0 %v948
        %1152 = vmatprep.subr.bf16.mxu0 0
        %1153 = vmatpush1.bf16.msra.mxu0 %v947
        %1154 = vmatprep.subr.bf16.mxu0 0
        %1155 = vmatpush1.bf16.msra.mxu0 %v946
        %1156 = vmatprep.subr.bf16.mxu0 0
        %1157 = vmatpush1.bf16.msra.mxu0 %v945
        %1158 = vmatprep.subr.bf16.mxu0 0
        %1159 = vmatpush1.bf16.msra.mxu0 %v944
        %1160 = vmatprep.subr.bf16.mxu0 0
        %1161 = vmatpush1.bf16.msra.mxu0 %v943
        %1162 = vmatprep.subr.bf16.mxu0 0
        %1163 = vmatpush1.bf16.msra.mxu0 %v942
        %1164 = vmatprep.subr.bf16.mxu0 0
        %1165 = vmatpush1.bf16.msra.mxu0 %v941
        %1166 = vmatprep.subr.bf16.mxu0 0
        %1167 = vmatpush2.bf16.msra.mxu0 %v956
        %1168 = vmatprep.subr.bf16.mxu0 0
        %1169 = vmatpush2.bf16.msra.mxu0 %v955
        %1170 = vmatprep.subr.bf16.mxu0 0
        %1171 = vmatpush2.bf16.msra.mxu0 %v954
        %1172 = vmatprep.subr.bf16.mxu0 0
        %1173 = vmatpush2.bf16.msra.mxu0 %v953
        %1174 = vmatprep.subr.bf16.mxu0 0
        %1175 = vmatpush2.bf16.msra.mxu0 %v952
        %1176 = vmatprep.subr.bf16.mxu0 0
        %1177 = vmatpush2.bf16.msra.mxu0 %v951
        %1178 = vmatprep.subr.bf16.mxu0 0
        %1179 = vmatpush2.bf16.msra.mxu0 %v950
        %1180 = vmatprep.subr.bf16.mxu0 0
        %1181 = vmatpush2.bf16.msra.mxu0 %v949
        %1182 = vmatprep.mubr.bf16.mxu0 %v672
        %1183 = vmatmul.mubr.bf16.gmra.mxu0 %v671
        %v1184 = vpop.f32.mrf.mxu0
        %v1185 = vadd.f32 %v1024, %v1184
        %v1186 = vpop.f32.mrf.mxu0
        %v1187 = vpop.f32.mrf.mxu0
        %v1188 = vadd.f32 %v1027, %v1187
        %v1189 = vpop.f32.mrf.mxu0
        %1190 = vmatprep.mubr.bf16.mxu0 %v676
        %1191 = vmatmul.mubr.bf16.gmra.mxu0 %v675
        %v1192 = vpop.f32.mrf.mxu0
        %v1193 = vadd.f32 %v1032, %v1192
        %v1194 = vpop.f32.mrf.mxu0
        %v1195 = vpop.f32.mrf.mxu0
        %v1196 = vadd.f32 %v1035, %v1195
        %v1197 = vpop.f32.mrf.mxu0
        %1198 = vmatprep.mubr.bf16.mxu0 %v680
        %1199 = vmatmul.mubr.bf16.gmra.mxu0 %v679
        %v1200 = vpop.f32.mrf.mxu0
        %v1201 = vadd.f32 %v1040, %v1200
        %v1202 = vpop.f32.mrf.mxu0
        %v1203 = vpop.f32.mrf.mxu0
        %v1204 = vadd.f32 %v1043, %v1203
        %v1205 = vpop.f32.mrf.mxu0
        %1206 = vmatprep.mubr.bf16.mxu0 %v684
        %1207 = vmatmul.mubr.bf16.gmra.mxu0 %v683
        %v1208 = vpop.f32.mrf.mxu0
        %v1209 = vadd.f32 %v1048, %v1208
        %v1210 = vpop.f32.mrf.mxu0
        %v1211 = vpop.f32.mrf.mxu0
        %v1212 = vadd.f32 %v1051, %v1211
        %v1213 = vpop.f32.mrf.mxu0
        %1214 = vmatprep.mubr.bf16.mxu0 %v688
        %1215 = vmatmul.mubr.bf16.gmra.mxu0 %v687
        %v1216 = vpop.f32.mrf.mxu0
        %v1217 = vadd.f32 %v1056, %v1216
        %v1218 = vpop.f32.mrf.mxu0
        %v1219 = vpop.f32.mrf.mxu0
        %v1220 = vadd.f32 %v1059, %v1219
        %v1221 = vpop.f32.mrf.mxu0
        %1222 = vmatprep.mubr.bf16.mxu0 %v692
        %1223 = vmatmul.mubr.bf16.gmra.mxu0 %v691
        %v1224 = vpop.f32.mrf.mxu0
        %v1225 = vadd.f32 %v1064, %v1224
        %v1226 = vpop.f32.mrf.mxu0
        %v1227 = vpop.f32.mrf.mxu0
        %v1228 = vadd.f32 %v1067, %v1227
        %v1229 = vpop.f32.mrf.mxu0
        %1230 = vmatprep.mubr.bf16.mxu0 %v696
        %1231 = vmatmul.mubr.bf16.gmra.mxu0 %v695
        %v1232 = vpop.f32.mrf.mxu0
        %v1233 = vadd.f32 %v1072, %v1232
        %v1234 = vpop.f32.mrf.mxu0
        %v1235 = vpop.f32.mrf.mxu0
        %v1236 = vadd.f32 %v1075, %v1235
        %v1237 = vpop.f32.mrf.mxu0
        %1238 = vmatprep.mubr.bf16.mxu0 %v700
        %1239 = vmatmul.mubr.bf16.gmra.mxu0 %v699
        %v1240 = vpop.f32.mrf.mxu0
        %v1241 = vadd.f32 %v1080, %v1240
        %v1242 = vpop.f32.mrf.mxu0
        %v1243 = vpop.f32.mrf.mxu0
        %v1244 = vadd.f32 %v1083, %v1243
        %v1245 = vpop.f32.mrf.mxu0
        %1246 = vmatprep.mubr.bf16.mxu0 %v704
        %1247 = vmatmul.mubr.bf16.gmra.mxu0 %v703
        %v1248 = vpop.f32.mrf.mxu0
        %v1249 = vadd.f32 %v1088, %v1248
        %v1250 = vpop.f32.mrf.mxu0
        %v1251 = vpop.f32.mrf.mxu0
        %v1252 = vadd.f32 %v1091, %v1251
        %v1253 = vpop.f32.mrf.mxu0
        %1254 = vmatprep.mubr.bf16.mxu0 %v708
        %1255 = vmatmul.mubr.bf16.gmra.mxu0 %v707
        %v1256 = vpop.f32.mrf.mxu0
        %v1257 = vadd.f32 %v1096, %v1256
        %v1258 = vpop.f32.mrf.mxu0
        %v1259 = vpop.f32.mrf.mxu0
        %v1260 = vadd.f32 %v1099, %v1259
        %v1261 = vpop.f32.mrf.mxu0
        %1262 = vmatprep.mubr.bf16.mxu0 %v712
        %1263 = vmatmul.mubr.bf16.gmra.mxu0 %v711
        %v1264 = vpop.f32.mrf.mxu0
        %v1265 = vadd.f32 %v1104, %v1264
        %v1266 = vpop.f32.mrf.mxu0
        %v1267 = vpop.f32.mrf.mxu0
        %v1268 = vadd.f32 %v1107, %v1267
        %v1269 = vpop.f32.mrf.mxu0
        %1270 = vmatprep.mubr.bf16.mxu0 %v716
        %1271 = vmatmul.mubr.bf16.gmra.mxu0 %v715
        %v1272 = vpop.f32.mrf.mxu0
        %v1273 = vadd.f32 %v1112, %v1272
        %v1274 = vpop.f32.mrf.mxu0
        %v1275 = vpop.f32.mrf.mxu0
        %v1276 = vadd.f32 %v1115, %v1275
        %v1277 = vpop.f32.mrf.mxu0
        %1278 = vmatprep.mubr.bf16.mxu0 %v720
        %1279 = vmatmul.mubr.bf16.gmra.mxu0 %v719
        %v1280 = vpop.f32.mrf.mxu0
        %v1281 = vadd.f32 %v1120, %v1280
        %v1282 = vpop.f32.mrf.mxu0
        %v1283 = vpop.f32.mrf.mxu0
        %v1284 = vadd.f32 %v1123, %v1283
        %v1285 = vpop.f32.mrf.mxu0
        %1286 = vmatprep.mubr.bf16.mxu0 %v724
        %1287 = vmatmul.mubr.bf16.gmra.mxu0 %v723
        %v1288 = vpop.f32.mrf.mxu0
        %v1289 = vadd.f32 %v1128, %v1288
        %v1290 = vpop.f32.mrf.mxu0
        %v1291 = vpop.f32.mrf.mxu0
        %v1292 = vadd.f32 %v1131, %v1291
        %v1293 = vpop.f32.mrf.mxu0
        %1294 = vmatprep.mubr.bf16.mxu0 %v728
        %1295 = vmatmul.mubr.bf16.gmra.mxu0 %v727
        %v1296 = vpop.f32.mrf.mxu0
        %v1297 = vadd.f32 %v1136, %v1296
        %v1298 = vpop.f32.mrf.mxu0
        %v1299 = vpop.f32.mrf.mxu0
        %v1300 = vadd.f32 %v1139, %v1299
        %v1301 = vpop.f32.mrf.mxu0
        %1302 = vmatprep.mubr.bf16.mxu0 %v732
        %1303 = vmatmul.mubr.bf16.gmra.mxu0 %v731
        %v1304 = vpop.f32.mrf.mxu0
        %v1305 = vadd.f32 %v1144, %v1304
        %v1306 = vpop.f32.mrf.mxu0
        %v1307 = vpop.f32.mrf.mxu0
        %v1308 = vadd.f32 %v1147, %v1307
        %v1309 = vpop.f32.mrf.mxu0
        %1310 = vdwg.mxu0
        %v1311 = vadd.f32 %v317, %v1185
        %v1312 = vadd.f32 %v318, %v1188
        %v1313 = vadd.f32 %v319, %v1193
        %v1314 = vadd.f32 %v320, %v1196
        %v1315 = vadd.f32 %v321, %v1201
        %v1316 = vadd.f32 %v322, %v1204
        %v1317 = vadd.f32 %v323, %v1209
        %v1318 = vadd.f32 %v324, %v1212
        %v1319 = vadd.f32 %v325, %v1217
        %v1320 = vadd.f32 %v326, %v1220
        %v1321 = vadd.f32 %v327, %v1225
        %v1322 = vadd.f32 %v328, %v1228
        %v1323 = vadd.f32 %v329, %v1233
        %v1324 = vadd.f32 %v330, %v1236
        %v1325 = vadd.f32 %v331, %v1241
        %v1326 = vadd.f32 %v332, %v1244
        %v1327 = vadd.f32 %v333, %v1249
        %v1328 = vadd.f32 %v334, %v1252
        %v1329 = vadd.f32 %v335, %v1257
        %v1330 = vadd.f32 %v336, %v1260
        %v1331 = vadd.f32 %v337, %v1265
        %v1332 = vadd.f32 %v338, %v1268
        %v1333 = vadd.f32 %v339, %v1273
        %v1334 = vadd.f32 %v340, %v1276
        %v1335 = vadd.f32 %v341, %v1281
        %v1336 = vadd.f32 %v342, %v1284
        %v1337 = vadd.f32 %v343, %v1289
        %v1338 = vadd.f32 %v344, %v1292
        %v1339 = vadd.f32 %v345, %v1297
        %v1340 = vadd.f32 %v346, %v1300
        %v1341 = vadd.f32 %v347, %v1305
        %v1342 = vadd.f32 %v348, %v1308
        %vm1343 = vcmask 326656
        %1344 = vst.msk [vmem:[#allocation2] sm:$0xff] %vm1343, %v1311
        %1345 = vst.msk [vmem:[#allocation2 + $0x8] sm:$0xff] %vm1343, %v1312
        %1346 = vst.msk [vmem:[#allocation2 + $0x10] sm:$0xff] %vm1343, %v1313
        %1347 = vst.msk [vmem:[#allocation2 + $0x18] sm:$0xff] %vm1343, %v1314
        %1348 = vst.msk [vmem:[#allocation2 + $0x20] sm:$0xff] %vm1343, %v1315
        %1349 = vst.msk [vmem:[#allocation2 + $0x28] sm:$0xff] %vm1343, %v1316
        %1350 = vst.msk [vmem:[#allocation2 + $0x30] sm:$0xff] %vm1343, %v1317
        %1351 = vst.msk [vmem:[#allocation2 + $0x38] sm:$0xff] %vm1343, %v1318
        %1352 = vst.msk [vmem:[#allocation2 + $0x40] sm:$0xff] %vm1343, %v1319
        %1353 = vst.msk [vmem:[#allocation2 + $0x48] sm:$0xff] %vm1343, %v1320
        %1354 = vst.msk [vmem:[#allocation2 + $0x50] sm:$0xff] %vm1343, %v1321
        %1355 = vst.msk [vmem:[#allocation2 + $0x58] sm:$0xff] %vm1343, %v1322
        %1356 = vst.msk [vmem:[#allocation2 + $0x60] sm:$0xff] %vm1343, %v1323
        %1357 = vst.msk [vmem:[#allocation2 + $0x68] sm:$0xff] %vm1343, %v1324
        %1358 = vst.msk [vmem:[#allocation2 + $0x70] sm:$0xff] %vm1343, %v1325
        %1359 = vst.msk [vmem:[#allocation2 + $0x78] sm:$0xff] %vm1343, %v1326
        %1360 = vst.msk [vmem:[#allocation2 + $0x80] sm:$0xff] %vm1343, %v1327
        %1361 = vst.msk [vmem:[#allocation2 + $0x88] sm:$0xff] %vm1343, %v1328
        %1362 = vst.msk [vmem:[#allocation2 + $0x90] sm:$0xff] %vm1343, %v1329
        %1363 = vst.msk [vmem:[#allocation2 + $0x98] sm:$0xff] %vm1343, %v1330
        %1364 = vst.msk [vmem:[#allocation2 + $0xa0] sm:$0xff] %vm1343, %v1331
        %1365 = vst.msk [vmem:[#allocation2 + $0xa8] sm:$0xff] %vm1343, %v1332
        %1366 = vst.msk [vmem:[#allocation2 + $0xb0] sm:$0xff] %vm1343, %v1333
        %1367 = vst.msk [vmem:[#allocation2 + $0xb8] sm:$0xff] %vm1343, %v1334
        %1368 = vst.msk [vmem:[#allocation2 + $0xc0] sm:$0xff] %vm1343, %v1335
        %1369 = vst.msk [vmem:[#allocation2 + $0xc8] sm:$0xff] %vm1343, %v1336
        %1370 = vst.msk [vmem:[#allocation2 + $0xd0] sm:$0xff] %vm1343, %v1337
        %1371 = vst.msk [vmem:[#allocation2 + $0xd8] sm:$0xff] %vm1343, %v1338
        %1372 = vst.msk [vmem:[#allocation2 + $0xe0] sm:$0xff] %vm1343, %v1339
        %1373 = vst.msk [vmem:[#allocation2 + $0xe8] sm:$0xff] %vm1343, %v1340
        %1374 = vst.msk [vmem:[#allocation2 + $0xf0] sm:$0xff] %vm1343, %v1341
        %1375 = vst.msk [vmem:[#allocation2 + $0xf8] sm:$0xff] %vm1343, %v1342
        %p1376 = scmp.eq.s32.totalorder %s22, 3
        // Predicated region
        $region49: #{tpu_custom_call.1} parent=39 // pred_check
          %p1377 = pneg %p1376
        $region50: #{tpu_custom_call.1} parent=39 // pred_check_branch
          %1379 = sbr.rel (%p1377) target = $region52
        $region51: #{tpu_custom_call.1} parent=39 // pred_region
          %v1380 = vld [vmem:[%s0] sm:$0xff]
          %v1381 = vld [vmem:[%s0 + $0x8] sm:$0xff]
          %v1382 = vld [vmem:[%s0 + $0x10] sm:$0xff]
          %v1383 = vld [vmem:[%s0 + $0x18] sm:$0xff]
          %v1384 = vld [vmem:[%s0 + $0x20] sm:$0xff]
          %v1385 = vld [vmem:[%s0 + $0x28] sm:$0xff]
          %v1386 = vld [vmem:[%s0 + $0x30] sm:$0xff]
          %v1387 = vld [vmem:[%s0 + $0x38] sm:$0xff]
          %v1388 = vld [vmem:[%s0 + $0x40] sm:$0xff]
          %v1389 = vld [vmem:[%s0 + $0x48] sm:$0xff]
          %v1390 = vld [vmem:[%s0 + $0x50] sm:$0xff]
          %v1391 = vld [vmem:[%s0 + $0x58] sm:$0xff]
          %v1392 = vld [vmem:[%s0 + $0x60] sm:$0xff]
          %v1393 = vld [vmem:[%s0 + $0x68] sm:$0xff]
          %v1394 = vld [vmem:[%s0 + $0x70] sm:$0xff]
          %v1395 = vld [vmem:[%s0 + $0x78] sm:$0xff]
          %v1396 = vld [vmem:[%s0 + $0x80] sm:$0xff]
          %v1397 = vld [vmem:[%s0 + $0x88] sm:$0xff]
          %v1398 = vld [vmem:[%s0 + $0x90] sm:$0xff]
          %v1399 = vld [vmem:[%s0 + $0x98] sm:$0xff]
          %v1400 = vld [vmem:[%s0 + $0xa0] sm:$0xff]
          %v1401 = vld [vmem:[%s0 + $0xa8] sm:$0xff]
          %v1402 = vld [vmem:[%s0 + $0xb0] sm:$0xff]
          %v1403 = vld [vmem:[%s0 + $0xb8] sm:$0xff]
          %v1404 = vld [vmem:[%s0 + $0xc0] sm:$0xff]
          %v1405 = vld [vmem:[%s0 + $0xc8] sm:$0xff]
          %v1406 = vld [vmem:[%s0 + $0xd0] sm:$0xff]
          %v1407 = vld [vmem:[%s0 + $0xd8] sm:$0xff]
          %v1408 = vld [vmem:[%s0 + $0xe0] sm:$0xff]
          %v1409 = vld [vmem:[%s0 + $0xe8] sm:$0xff]
          %v1410 = vld [vmem:[%s0 + $0xf0] sm:$0xff]
          %v1411 = vld [vmem:[%s0 + $0xf8] sm:$0xff]
          %v1412 = vld [vmem:[%s1] sm:$0xff]
          %v1413 = vld [vmem:[%s1 + $0x8] sm:$0xff]
          %v1414 = vld [vmem:[%s1 + $0x10] sm:$0xff]
          %v1415 = vld [vmem:[%s1 + $0x18] sm:$0xff]
          %v1416 = vld [vmem:[%s1 + $0x20] sm:$0xff]
          %v1417 = vld [vmem:[%s1 + $0x28] sm:$0xff]
          %v1418 = vld [vmem:[%s1 + $0x30] sm:$0xff]
          %v1419 = vld [vmem:[%s1 + $0x38] sm:$0xff]
          %v1420 = vld [vmem:[%s1 + $0x40] sm:$0xff]
          %v1421 = vld [vmem:[%s1 + $0x48] sm:$0xff]
          %v1422 = vld [vmem:[%s1 + $0x50] sm:$0xff]
          %v1423 = vld [vmem:[%s1 + $0x58] sm:$0xff]
          %v1424 = vld [vmem:[%s1 + $0x60] sm:$0xff]
          %v1425 = vld [vmem:[%s1 + $0x68] sm:$0xff]
          %v1426 = vld [vmem:[%s1 + $0x70] sm:$0xff]
          %v1427 = vld [vmem:[%s1 + $0x78] sm:$0xff]
          %v1428 = vld [vmem:[%s1 + $0x80] sm:$0xff]
          %v1429 = vld [vmem:[%s1 + $0x88] sm:$0xff]
          %v1430 = vld [vmem:[%s1 + $0x90] sm:$0xff]
          %v1431 = vld [vmem:[%s1 + $0x98] sm:$0xff]
          %v1432 = vld [vmem:[%s1 + $0xa0] sm:$0xff]
          %v1433 = vld [vmem:[%s1 + $0xa8] sm:$0xff]
          %v1434 = vld [vmem:[%s1 + $0xb0] sm:$0xff]
          %v1435 = vld [vmem:[%s1 + $0xb8] sm:$0xff]
          %v1436 = vld [vmem:[%s1 + $0xc0] sm:$0xff]
          %v1437 = vld [vmem:[%s1 + $0xc8] sm:$0xff]
          %v1438 = vld [vmem:[%s1 + $0xd0] sm:$0xff]
          %v1439 = vld [vmem:[%s1 + $0xd8] sm:$0xff]
          %v1440 = vld [vmem:[%s1 + $0xe0] sm:$0xff]
          %v1441 = vld [vmem:[%s1 + $0xe8] sm:$0xff]
          %v1442 = vld [vmem:[%s1 + $0xf0] sm:$0xff]
          %v1443 = vld [vmem:[%s1 + $0xf8] sm:$0xff]
          %vm1444 = vcmask 64512
          %v1446 = vsel %vm1444, %v1380, 0
          %v1449 = vsel %vm1444, %v1381, 0
          %v1452 = vsel %vm1444, %v1382, 0
          %v1455 = vsel %vm1444, %v1383, 0
          %v1458 = vsel %vm1444, %v1384, 0
          %v1461 = vsel %vm1444, %v1385, 0
          %v1464 = vsel %vm1444, %v1386, 0
          %v1467 = vsel %vm1444, %v1387, 0
          %v1470 = vsel %vm1444, %v1388, 0
          %v1473 = vsel %vm1444, %v1389, 0
          %v1476 = vsel %vm1444, %v1390, 0
          %v1479 = vsel %vm1444, %v1391, 0
          %v1482 = vsel %vm1444, %v1392, 0
          %v1485 = vsel %vm1444, %v1393, 0
          %v1488 = vsel %vm1444, %v1394, 0
          %v1491 = vsel %vm1444, %v1395, 0
          %v1494 = vsel %vm1444, %v1396, 0
          %v1497 = vsel %vm1444, %v1397, 0
          %v1500 = vsel %vm1444, %v1398, 0
          %v1503 = vsel %vm1444, %v1399, 0
          %v1506 = vsel %vm1444, %v1400, 0
          %v1509 = vsel %vm1444, %v1401, 0
          %v1512 = vsel %vm1444, %v1402, 0
          %v1515 = vsel %vm1444, %v1403, 0
          %v1518 = vsel %vm1444, %v1404, 0
          %v1521 = vsel %vm1444, %v1405, 0
          %v1524 = vsel %vm1444, %v1406, 0
          %v1527 = vsel %vm1444, %v1407, 0
          %v1530 = vsel %vm1444, %v1408, 0
          %v1533 = vsel %vm1444, %v1409, 0
          %v1536 = vsel %vm1444, %v1410, 0
          %v1539 = vsel %vm1444, %v1411, 0
          %v1542 = vsel %vm1444, %v1412, 0
          %v1545 = vsel %vm1444, %v1413, 0
          %v1548 = vsel %vm1444, %v1414, 0
          %v1551 = vsel %vm1444, %v1415, 0
          %v1554 = vsel %vm1444, %v1416, 0
          %v1557 = vsel %vm1444, %v1417, 0
          %v1560 = vsel %vm1444, %v1418, 0
          %v1563 = vsel %vm1444, %v1419, 0
          %v1566 = vsel %vm1444, %v1420, 0
          %v1569 = vsel %vm1444, %v1421, 0
          %v1572 = vsel %vm1444, %v1422, 0
          %v1575 = vsel %vm1444, %v1423, 0
          %v1578 = vsel %vm1444, %v1424, 0
          %v1581 = vsel %vm1444, %v1425, 0
          %v1584 = vsel %vm1444, %v1426, 0
          %v1587 = vsel %vm1444, %v1427, 0
          %v1590 = vsel %vm1444, %v1428, 0
          %v1593 = vsel %vm1444, %v1429, 0
          %v1596 = vsel %vm1444, %v1430, 0
          %v1599 = vsel %vm1444, %v1431, 0
          %v1602 = vsel %vm1444, %v1432, 0
          %v1605 = vsel %vm1444, %v1433, 0
          %v1608 = vsel %vm1444, %v1434, 0
          %v1611 = vsel %vm1444, %v1435, 0
          %v1614 = vsel %vm1444, %v1436, 0
          %v1617 = vsel %vm1444, %v1437, 0
          %v1620 = vsel %vm1444, %v1438, 0
          %v1623 = vsel %vm1444, %v1439, 0
          %v1626 = vsel %vm1444, %v1440, 0
          %v1629 = vsel %vm1444, %v1441, 0
          %v1632 = vsel %vm1444, %v1442, 0
          %v1635 = vsel %vm1444, %v1443, 0
          %1637 = vmatprep.subr.mxu0 0.0
          %1638 = vmatpush1.xpose.msra.mxu0 %v1587
          %1639 = vmatprep.subr.mxu0 0.0
          %1640 = vmatpush1.xpose.msra.mxu0 %v1584
          %1641 = vmatprep.subr.mxu0 0.0
          %1642 = vmatpush1.xpose.msra.mxu0 %v1581
          %1643 = vmatprep.subr.mxu0 0.0
          %1644 = vmatpush1.xpose.msra.mxu0 %v1578
          %1645 = vmatprep.subr.mxu0 0.0
          %1646 = vmatpush1.xpose.msra.mxu0 %v1575
          %1647 = vmatprep.subr.mxu0 0.0
          %1648 = vmatpush1.xpose.msra.mxu0 %v1572
          %1649 = vmatprep.subr.mxu0 0.0
          %1650 = vmatpush1.xpose.msra.mxu0 %v1569
          %1651 = vmatprep.subr.mxu0 0.0
          %1652 = vmatpush1.xpose.msra.mxu0 %v1566
          %1653 = vmatprep.subr.mxu0 0.0
          %1654 = vmatpush1.xpose.msra.mxu0 %v1563
          %1655 = vmatprep.subr.mxu0 0.0
          %1656 = vmatpush1.xpose.msra.mxu0 %v1560
          %1657 = vmatprep.subr.mxu0 0.0
          %1658 = vmatpush1.xpose.msra.mxu0 %v1557
          %1659 = vmatprep.subr.mxu0 0.0
          %1660 = vmatpush1.xpose.msra.mxu0 %v1554
          %1661 = vmatprep.subr.mxu0 0.0
          %1662 = vmatpush1.xpose.msra.mxu0 %v1551
          %1663 = vmatprep.subr.mxu0 0.0
          %1664 = vmatpush1.xpose.msra.mxu0 %v1548
          %1665 = vmatprep.subr.mxu0 0.0
          %1666 = vmatpush1.xpose.msra.mxu0 %v1545
          %1667 = vmatprep.subr.mxu0 0.0
          %1668 = vmatpush1.xpose.msra.mxu0 %v1542
          %1669 = vmatprep.subr.mxu0 0.0
          %1670 = vmatpush2.xpose.msra.mxu0 %v1635
          %1671 = vmatprep.subr.mxu0 0.0
          %1672 = vmatpush2.xpose.msra.mxu0 %v1632
          %1673 = vmatprep.subr.mxu0 0.0
          %1674 = vmatpush2.xpose.msra.mxu0 %v1629
          %1675 = vmatprep.subr.mxu0 0.0
          %1676 = vmatpush2.xpose.msra.mxu0 %v1626
          %1677 = vmatprep.subr.mxu0 0.0
          %1678 = vmatpush2.xpose.msra.mxu0 %v1623
          %1679 = vmatprep.subr.mxu0 0.0
          %1680 = vmatpush2.xpose.msra.mxu0 %v1620
          %1681 = vmatprep.subr.mxu0 0.0
          %1682 = vmatpush2.xpose.msra.mxu0 %v1617
          %1683 = vmatprep.subr.mxu0 0.0
          %1684 = vmatpush2.xpose.msra.mxu0 %v1614
          %1685 = vmatprep.subr.mxu0 0.0
          %1686 = vmatpush2.xpose.msra.mxu0 %v1611
          %1687 = vmatprep.subr.mxu0 0.0
          %1688 = vmatpush2.xpose.msra.mxu0 %v1608
          %1689 = vmatprep.subr.mxu0 0.0
          %1690 = vmatpush2.xpose.msra.mxu0 %v1605
          %1691 = vmatprep.subr.mxu0 0.0
          %1692 = vmatpush2.xpose.msra.mxu0 %v1602
          %1693 = vmatprep.subr.mxu0 0.0
          %1694 = vmatpush2.xpose.msra.mxu0 %v1599
          %1695 = vmatprep.subr.mxu0 0.0
          %1696 = vmatpush2.xpose.msra.mxu0 %v1596
          %1697 = vmatprep.subr.mxu0 0.0
          %1698 = vmatpush2.xpose.msra.mxu0 %v1593
          %1699 = vmatprep.subr.mxu0 0.0
          %1700 = vmatpush2.xpose.msra.mxu0 %v1590
          %1701 = vmatprep.mubr.f32.mxu0 0.0
          %1702 = vmatmul.mubr.f32.gmra.mxu0 %v1446
          %v1703 = vpop.f32.mrf.mxu0
          %v1704 = vadd.f32 0.0, %v1703
          %v1705 = vpop.f32.mrf.mxu0
          %v1706 = vadd.f32 0.0, %v1705
          %1707 = vmatprep.mubr.f32.mxu0 0.0
          %1708 = vmatmul.mubr.f32.gmra.mxu0 %v1449
          %v1709 = vpop.f32.mrf.mxu0
          %v1710 = vadd.f32 0.0, %v1709
          %v1711 = vpop.f32.mrf.mxu0
          %v1712 = vadd.f32 0.0, %v1711
          %1713 = vmatprep.mubr.f32.mxu0 0.0
          %1714 = vmatmul.mubr.f32.gmra.mxu0 %v1452
          %v1715 = vpop.f32.mrf.mxu0
          %v1716 = vadd.f32 0.0, %v1715
          %v1717 = vpop.f32.mrf.mxu0
          %v1718 = vadd.f32 0.0, %v1717
          %1719 = vmatprep.mubr.f32.mxu0 0.0
          %1720 = vmatmul.mubr.f32.gmra.mxu0 %v1455
          %v1721 = vpop.f32.mrf.mxu0
          %v1722 = vadd.f32 0.0, %v1721
          %v1723 = vpop.f32.mrf.mxu0
          %v1724 = vadd.f32 0.0, %v1723
          %1725 = vmatprep.mubr.f32.mxu0 0.0
          %1726 = vmatmul.mubr.f32.gmra.mxu0 %v1458
          %v1727 = vpop.f32.mrf.mxu0
          %v1728 = vadd.f32 0.0, %v1727
          %v1729 = vpop.f32.mrf.mxu0
          %v1730 = vadd.f32 0.0, %v1729
          %1731 = vmatprep.mubr.f32.mxu0 0.0
          %1732 = vmatmul.mubr.f32.gmra.mxu0 %v1461
          %v1733 = vpop.f32.mrf.mxu0
          %v1734 = vadd.f32 0.0, %v1733
          %v1735 = vpop.f32.mrf.mxu0
          %v1736 = vadd.f32 0.0, %v1735
          %1737 = vmatprep.mubr.f32.mxu0 0.0
          %1738 = vmatmul.mubr.f32.gmra.mxu0 %v1464
          %v1739 = vpop.f32.mrf.mxu0
          %v1740 = vadd.f32 0.0, %v1739
          %v1741 = vpop.f32.mrf.mxu0
          %v1742 = vadd.f32 0.0, %v1741
          %1743 = vmatprep.mubr.f32.mxu0 0.0
          %1744 = vmatmul.mubr.f32.gmra.mxu0 %v1467
          %v1745 = vpop.f32.mrf.mxu0
          %v1746 = vadd.f32 0.0, %v1745
          %v1747 = vpop.f32.mrf.mxu0
          %v1748 = vadd.f32 0.0, %v1747
          %1749 = vmatprep.mubr.f32.mxu0 0.0
          %1750 = vmatmul.mubr.f32.gmra.mxu0 %v1470
          %v1751 = vpop.f32.mrf.mxu0
          %v1752 = vadd.f32 0.0, %v1751
          %v1753 = vpop.f32.mrf.mxu0
          %v1754 = vadd.f32 0.0, %v1753
          %1755 = vmatprep.mubr.f32.mxu0 0.0
          %1756 = vmatmul.mubr.f32.gmra.mxu0 %v1473
          %v1757 = vpop.f32.mrf.mxu0
          %v1758 = vadd.f32 0.0, %v1757
          %v1759 = vpop.f32.mrf.mxu0
          %v1760 = vadd.f32 0.0, %v1759
          %1761 = vmatprep.mubr.f32.mxu0 0.0
          %1762 = vmatmul.mubr.f32.gmra.mxu0 %v1476
          %v1763 = vpop.f32.mrf.mxu0
          %v1764 = vadd.f32 0.0, %v1763
          %v1765 = vpop.f32.mrf.mxu0
          %v1766 = vadd.f32 0.0, %v1765
          %1767 = vmatprep.mubr.f32.mxu0 0.0
          %1768 = vmatmul.mubr.f32.gmra.mxu0 %v1479
          %v1769 = vpop.f32.mrf.mxu0
          %v1770 = vadd.f32 0.0, %v1769
          %v1771 = vpop.f32.mrf.mxu0
          %v1772 = vadd.f32 0.0, %v1771
          %1773 = vmatprep.mubr.f32.mxu0 0.0
          %1774 = vmatmul.mubr.f32.gmra.mxu0 %v1482
          %v1775 = vpop.f32.mrf.mxu0
          %v1776 = vadd.f32 0.0, %v1775
          %v1777 = vpop.f32.mrf.mxu0
          %v1778 = vadd.f32 0.0, %v1777
          %1779 = vmatprep.mubr.f32.mxu0 0.0
          %1780 = vmatmul.mubr.f32.gmra.mxu0 %v1485
          %v1781 = vpop.f32.mrf.mxu0
          %v1782 = vadd.f32 0.0, %v1781
          %v1783 = vpop.f32.mrf.mxu0
          %v1784 = vadd.f32 0.0, %v1783
          %1785 = vmatprep.mubr.f32.mxu0 0.0
          %1786 = vmatmul.mubr.f32.gmra.mxu0 %v1488
          %v1787 = vpop.f32.mrf.mxu0
          %v1788 = vadd.f32 0.0, %v1787
          %v1789 = vpop.f32.mrf.mxu0
          %v1790 = vadd.f32 0.0, %v1789
          %1791 = vmatprep.mubr.f32.mxu0 0.0
          %1792 = vmatmul.mubr.f32.gmra.mxu0 %v1491
          %v1793 = vpop.f32.mrf.mxu0
          %v1794 = vadd.f32 0.0, %v1793
          %v1795 = vpop.f32.mrf.mxu0
          %v1796 = vadd.f32 0.0, %v1795
          %1797 = vmatprep.mubr.f32.mxu0 0.0
          %1798 = vmatmul.mubr.f32.gmra.mxu0 %v1494
          %v1799 = vpop.f32.mrf.mxu0
          %v1800 = vadd.f32 0.0, %v1799
          %v1801 = vpop.f32.mrf.mxu0
          %v1802 = vadd.f32 0.0, %v1801
          %1803 = vmatprep.mubr.f32.mxu0 0.0
          %1804 = vmatmul.mubr.f32.gmra.mxu0 %v1497
          %v1805 = vpop.f32.mrf.mxu0
          %v1806 = vadd.f32 0.0, %v1805
          %v1807 = vpop.f32.mrf.mxu0
          %v1808 = vadd.f32 0.0, %v1807
          %1809 = vmatprep.mubr.f32.mxu0 0.0
          %1810 = vmatmul.mubr.f32.gmra.mxu0 %v1500
          %v1811 = vpop.f32.mrf.mxu0
          %v1812 = vadd.f32 0.0, %v1811
          %v1813 = vpop.f32.mrf.mxu0
          %v1814 = vadd.f32 0.0, %v1813
          %1815 = vmatprep.mubr.f32.mxu0 0.0
          %1816 = vmatmul.mubr.f32.gmra.mxu0 %v1503
          %v1817 = vpop.f32.mrf.mxu0
          %v1818 = vadd.f32 0.0, %v1817
          %v1819 = vpop.f32.mrf.mxu0
          %v1820 = vadd.f32 0.0, %v1819
          %1821 = vmatprep.mubr.f32.mxu0 0.0
          %1822 = vmatmul.mubr.f32.gmra.mxu0 %v1506
          %v1823 = vpop.f32.mrf.mxu0
          %v1824 = vadd.f32 0.0, %v1823
          %v1825 = vpop.f32.mrf.mxu0
          %v1826 = vadd.f32 0.0, %v1825
          %1827 = vmatprep.mubr.f32.mxu0 0.0
          %1828 = vmatmul.mubr.f32.gmra.mxu0 %v1509
          %v1829 = vpop.f32.mrf.mxu0
          %v1830 = vadd.f32 0.0, %v1829
          %v1831 = vpop.f32.mrf.mxu0
          %v1832 = vadd.f32 0.0, %v1831
          %1833 = vmatprep.mubr.f32.mxu0 0.0
          %1834 = vmatmul.mubr.f32.gmra.mxu0 %v1512
          %v1835 = vpop.f32.mrf.mxu0
          %v1836 = vadd.f32 0.0, %v1835
          %v1837 = vpop.f32.mrf.mxu0
          %v1838 = vadd.f32 0.0, %v1837
          %1839 = vmatprep.mubr.f32.mxu0 0.0
          %1840 = vmatmul.mubr.f32.gmra.mxu0 %v1515
          %v1841 = vpop.f32.mrf.mxu0
          %v1842 = vadd.f32 0.0, %v1841
          %v1843 = vpop.f32.mrf.mxu0
          %v1844 = vadd.f32 0.0, %v1843
          %1845 = vmatprep.mubr.f32.mxu0 0.0
          %1846 = vmatmul.mubr.f32.gmra.mxu0 %v1518
          %v1847 = vpop.f32.mrf.mxu0
          %v1848 = vadd.f32 0.0, %v1847
          %v1849 = vpop.f32.mrf.mxu0
          %v1850 = vadd.f32 0.0, %v1849
          %1851 = vmatprep.mubr.f32.mxu0 0.0
          %1852 = vmatmul.mubr.f32.gmra.mxu0 %v1521
          %v1853 = vpop.f32.mrf.mxu0
          %v1854 = vadd.f32 0.0, %v1853
          %v1855 = vpop.f32.mrf.mxu0
          %v1856 = vadd.f32 0.0, %v1855
          %1857 = vmatprep.mubr.f32.mxu0 0.0
          %1858 = vmatmul.mubr.f32.gmra.mxu0 %v1524
          %v1859 = vpop.f32.mrf.mxu0
          %v1860 = vadd.f32 0.0, %v1859
          %v1861 = vpop.f32.mrf.mxu0
          %v1862 = vadd.f32 0.0, %v1861
          %1863 = vmatprep.mubr.f32.mxu0 0.0
          %1864 = vmatmul.mubr.f32.gmra.mxu0 %v1527
          %v1865 = vpop.f32.mrf.mxu0
          %v1866 = vadd.f32 0.0, %v1865
          %v1867 = vpop.f32.mrf.mxu0
          %v1868 = vadd.f32 0.0, %v1867
          %1869 = vmatprep.mubr.f32.mxu0 0.0
          %1870 = vmatmul.mubr.f32.gmra.mxu0 %v1530
          %v1871 = vpop.f32.mrf.mxu0
          %v1872 = vadd.f32 0.0, %v1871
          %v1873 = vpop.f32.mrf.mxu0
          %v1874 = vadd.f32 0.0, %v1873
          %1875 = vmatprep.mubr.f32.mxu0 0.0
          %1876 = vmatmul.mubr.f32.gmra.mxu0 %v1533
          %v1877 = vpop.f32.mrf.mxu0
          %v1878 = vadd.f32 0.0, %v1877
          %v1879 = vpop.f32.mrf.mxu0
          %v1880 = vadd.f32 0.0, %v1879
          %1881 = vmatprep.mubr.f32.mxu0 0.0
          %1882 = vmatmul.mubr.f32.gmra.mxu0 %v1536
          %v1883 = vpop.f32.mrf.mxu0
          %v1884 = vadd.f32 0.0, %v1883
          %v1885 = vpop.f32.mrf.mxu0
          %v1886 = vadd.f32 0.0, %v1885
          %1887 = vmatprep.mubr.f32.mxu0 0.0
          %1888 = vmatmul.mubr.f32.gmra.mxu0 %v1539
          %v1889 = vpop.f32.mrf.mxu0
          %v1890 = vadd.f32 0.0, %v1889
          %v1891 = vpop.f32.mrf.mxu0
          %v1892 = vadd.f32 0.0, %v1891
          %1893 = vdwg.mxu0
          %v1894 = vpack.c.bf16 %v1710, %v1704
          %v1895 = vpack.c.bf16 %v1712, %v1706
          %v1896 = vpack.c.bf16 %v1722, %v1716
          %v1897 = vpack.c.bf16 %v1724, %v1718
          %v1898 = vpack.c.bf16 %v1734, %v1728
          %v1899 = vpack.c.bf16 %v1736, %v1730
          %v1900 = vpack.c.bf16 %v1746, %v1740
          %v1901 = vpack.c.bf16 %v1748, %v1742
          %v1902 = vpack.c.bf16 %v1758, %v1752
          %v1903 = vpack.c.bf16 %v1760, %v1754
          %v1904 = vpack.c.bf16 %v1770, %v1764
          %v1905 = vpack.c.bf16 %v1772, %v1766
          %v1906 = vpack.c.bf16 %v1782, %v1776
          %v1907 = vpack.c.bf16 %v1784, %v1778
          %v1908 = vpack.c.bf16 %v1794, %v1788
          %v1909 = vpack.c.bf16 %v1796, %v1790
          %v1910 = vpack.c.bf16 %v1806, %v1800
          %v1911 = vpack.c.bf16 %v1808, %v1802
          %v1912 = vpack.c.bf16 %v1818, %v1812
          %v1913 = vpack.c.bf16 %v1820, %v1814
          %v1914 = vpack.c.bf16 %v1830, %v1824
          %v1915 = vpack.c.bf16 %v1832, %v1826
          %v1916 = vpack.c.bf16 %v1842, %v1836
          %v1917 = vpack.c.bf16 %v1844, %v1838
          %v1918 = vpack.c.bf16 %v1854, %v1848
          %v1919 = vpack.c.bf16 %v1856, %v1850
          %v1920 = vpack.c.bf16 %v1866, %v1860
          %v1921 = vpack.c.bf16 %v1868, %v1862
          %v1922 = vpack.c.bf16 %v1878, %v1872
          %v1923 = vpack.c.bf16 %v1880, %v1874
          %v1924 = vpack.c.bf16 %v1890, %v1884
          %v1925 = vpack.c.bf16 %v1892, %v1886
          %v1958 = vunpack.c.l.b16 %v1894
          %v1959 = vunpack.c.l.b16 %v1895
          %v1960 = vunpack.c.h.b16 %v1894
          %v1961 = vunpack.c.h.b16 %v1895
          %v1962 = vunpack.c.l.b16 %v1896
          %v1963 = vunpack.c.l.b16 %v1897
          %v1964 = vunpack.c.h.b16 %v1896
          %v1965 = vunpack.c.h.b16 %v1897
          %v1966 = vunpack.c.l.b16 %v1898
          %v1967 = vunpack.c.l.b16 %v1899
          %v1968 = vunpack.c.h.b16 %v1898
          %v1969 = vunpack.c.h.b16 %v1899
          %v1970 = vunpack.c.l.b16 %v1900
          %v1971 = vunpack.c.l.b16 %v1901
          %v1972 = vunpack.c.h.b16 %v1900
          %v1973 = vunpack.c.h.b16 %v1901
          %v1974 = vunpack.c.l.b16 %v1902
          %v1975 = vunpack.c.l.b16 %v1903
          %v1976 = vunpack.c.h.b16 %v1902
          %v1977 = vunpack.c.h.b16 %v1903
          %v1978 = vunpack.c.l.b16 %v1904
          %v1979 = vunpack.c.l.b16 %v1905
          %v1980 = vunpack.c.h.b16 %v1904
          %v1981 = vunpack.c.h.b16 %v1905
          %v1982 = vunpack.c.l.b16 %v1906
          %v1983 = vunpack.c.l.b16 %v1907
          %v1984 = vunpack.c.h.b16 %v1906
          %v1985 = vunpack.c.h.b16 %v1907
          %v1986 = vunpack.c.l.b16 %v1908
          %v1987 = vunpack.c.l.b16 %v1909
          %v1988 = vunpack.c.h.b16 %v1908
          %v1989 = vunpack.c.h.b16 %v1909
          %v1990 = vunpack.c.l.b16 %v1910
          %v1991 = vunpack.c.l.b16 %v1911
          %v1992 = vunpack.c.h.b16 %v1910
          %v1993 = vunpack.c.h.b16 %v1911
          %v1994 = vunpack.c.l.b16 %v1912
          %v1995 = vunpack.c.l.b16 %v1913
          %v1996 = vunpack.c.h.b16 %v1912
          %v1997 = vunpack.c.h.b16 %v1913
          %v1998 = vunpack.c.l.b16 %v1914
          %v1999 = vunpack.c.l.b16 %v1915
          %v2000 = vunpack.c.h.b16 %v1914
          %v2001 = vunpack.c.h.b16 %v1915
          %v2002 = vunpack.c.l.b16 %v1916
          %v2003 = vunpack.c.l.b16 %v1917
          %v2004 = vunpack.c.h.b16 %v1916
          %v2005 = vunpack.c.h.b16 %v1917
          %v2006 = vunpack.c.l.b16 %v1918
          %v2007 = vunpack.c.l.b16 %v1919
          %v2008 = vunpack.c.h.b16 %v1918
          %v2009 = vunpack.c.h.b16 %v1919
          %v2010 = vunpack.c.l.b16 %v1920
          %v2011 = vunpack.c.l.b16 %v1921
          %v2012 = vunpack.c.h.b16 %v1920
          %v2013 = vunpack.c.h.b16 %v1921
          %v2014 = vunpack.c.l.b16 %v1922
          %v2015 = vunpack.c.l.b16 %v1923
          %v2016 = vunpack.c.h.b16 %v1922
          %v2017 = vunpack.c.h.b16 %v1923
          %v2018 = vunpack.c.l.b16 %v1924
          %v2019 = vunpack.c.l.b16 %v1925
          %v2020 = vunpack.c.h.b16 %v1924
          %v2021 = vunpack.c.h.b16 %v1925
          %v2022 = vpack.c.b16 %v1959, %v1958
          %v2023 = vpack.c.b16 %v1961, %v1960
          %v2024 = vpack.c.b16 %v1963, %v1962
          %v2025 = vpack.c.b16 %v1965, %v1964
          %v2026 = vpack.c.b16 %v1967, %v1966
          %v2027 = vpack.c.b16 %v1969, %v1968
          %v2028 = vpack.c.b16 %v1971, %v1970
          %v2029 = vpack.c.b16 %v1973, %v1972
          %v2030 = vpack.c.b16 %v1975, %v1974
          %v2031 = vpack.c.b16 %v1977, %v1976
          %v2032 = vpack.c.b16 %v1979, %v1978
          %v2033 = vpack.c.b16 %v1981, %v1980
          %v2034 = vpack.c.b16 %v1983, %v1982
          %v2035 = vpack.c.b16 %v1985, %v1984
          %v2036 = vpack.c.b16 %v1987, %v1986
          %v2037 = vpack.c.b16 %v1989, %v1988
          %v2038 = vpack.c.b16 %v1991, %v1990
          %v2039 = vpack.c.b16 %v1993, %v1992
          %v2040 = vpack.c.b16 %v1995, %v1994
          %v2041 = vpack.c.b16 %v1997, %v1996
          %v2042 = vpack.c.b16 %v1999, %v1998
          %v2043 = vpack.c.b16 %v2001, %v2000
          %v2044 = vpack.c.b16 %v2003, %v2002
          %v2045 = vpack.c.b16 %v2005, %v2004
          %v2046 = vpack.c.b16 %v2007, %v2006
          %v2047 = vpack.c.b16 %v2009, %v2008
          %v2048 = vpack.c.b16 %v2011, %v2010
          %v2049 = vpack.c.b16 %v2013, %v2012
          %v2050 = vpack.c.b16 %v2015, %v2014
          %v2051 = vpack.c.b16 %v2017, %v2016
          %v2052 = vpack.c.b16 %v2019, %v2018
          %v2053 = vpack.c.b16 %v2021, %v2020
          %2086 = vst [vmem:[#allocation6] sm:$0xff] %v2022
          %2087 = vst [vmem:[#allocation6 + $0x8] sm:$0xff] %v2023
          %2088 = vst [vmem:[#allocation6 + $0x10] sm:$0xff] %v2024
          %2089 = vst [vmem:[#allocation6 + $0x18] sm:$0xff] %v2025
          %2090 = vst [vmem:[#allocation6 + $0x20] sm:$0xff] %v2026
          %2091 = vst [vmem:[#allocation6 + $0x28] sm:$0xff] %v2027
          %2092 = vst [vmem:[#allocation6 + $0x30] sm:$0xff] %v2028
          %2093 = vst [vmem:[#allocation6 + $0x38] sm:$0xff] %v2029
          %2094 = vst [vmem:[#allocation6 + $0x40] sm:$0xff] %v2030
          %2095 = vst [vmem:[#allocation6 + $0x48] sm:$0xff] %v2031
          %2096 = vst [vmem:[#allocation6 + $0x50] sm:$0xff] %v2032
          %2097 = vst [vmem:[#allocation6 + $0x58] sm:$0xff] %v2033
          %2098 = vst [vmem:[#allocation6 + $0x60] sm:$0xff] %v2034
          %2099 = vst [vmem:[#allocation6 + $0x68] sm:$0xff] %v2035
          %2100 = vst [vmem:[#allocation6 + $0x70] sm:$0xff] %v2036
          %2101 = vst [vmem:[#allocation6 + $0x78] sm:$0xff] %v2037
          %2102 = vst [vmem:[#allocation6 + $0x80] sm:$0xff] %v2038
          %2103 = vst [vmem:[#allocation6 + $0x88] sm:$0xff] %v2039
          %2104 = vst [vmem:[#allocation6 + $0x90] sm:$0xff] %v2040
          %2105 = vst [vmem:[#allocation6 + $0x98] sm:$0xff] %v2041
          %2106 = vst [vmem:[#allocation6 + $0xa0] sm:$0xff] %v2042
          %2107 = vst [vmem:[#allocation6 + $0xa8] sm:$0xff] %v2043
          %2108 = vst [vmem:[#allocation6 + $0xb0] sm:$0xff] %v2044
          %2109 = vst [vmem:[#allocation6 + $0xb8] sm:$0xff] %v2045
          %2110 = vst [vmem:[#allocation6 + $0xc0] sm:$0xff] %v2046
          %2111 = vst [vmem:[#allocation6 + $0xc8] sm:$0xff] %v2047
          %2112 = vst [vmem:[#allocation6 + $0xd0] sm:$0xff] %v2048
          %2113 = vst [vmem:[#allocation6 + $0xd8] sm:$0xff] %v2049
          %2114 = vst [vmem:[#allocation6 + $0xe0] sm:$0xff] %v2050
          %2115 = vst [vmem:[#allocation6 + $0xe8] sm:$0xff] %v2051
          %2116 = vst [vmem:[#allocation6 + $0xf0] sm:$0xff] %v2052
          %2117 = vst [vmem:[#allocation6 + $0xf8] sm:$0xff] %v2053
          %v2118 = vld [vmem:[#allocation2] sm:$0xff]
          %v2119 = vld [vmem:[#allocation2 + $0x8] sm:$0xff]
          %v2120 = vld [vmem:[#allocation2 + $0x10] sm:$0xff]
          %v2121 = vld [vmem:[#allocation2 + $0x18] sm:$0xff]
          %v2122 = vld [vmem:[#allocation2 + $0x20] sm:$0xff]
          %v2123 = vld [vmem:[#allocation2 + $0x28] sm:$0xff]
          %v2124 = vld [vmem:[#allocation2 + $0x30] sm:$0xff]
          %v2125 = vld [vmem:[#allocation2 + $0x38] sm:$0xff]
          %v2126 = vld [vmem:[#allocation2 + $0x40] sm:$0xff]
          %v2127 = vld [vmem:[#allocation2 + $0x48] sm:$0xff]
          %v2128 = vld [vmem:[#allocation2 + $0x50] sm:$0xff]
          %v2129 = vld [vmem:[#allocation2 + $0x58] sm:$0xff]
          %v2130 = vld [vmem:[#allocation2 + $0x60] sm:$0xff]
          %v2131 = vld [vmem:[#allocation2 + $0x68] sm:$0xff]
          %v2132 = vld [vmem:[#allocation2 + $0x70] sm:$0xff]
          %v2133 = vld [vmem:[#allocation2 + $0x78] sm:$0xff]
          %v2134 = vld [vmem:[#allocation2 + $0x80] sm:$0xff]
          %v2135 = vld [vmem:[#allocation2 + $0x88] sm:$0xff]
          %v2136 = vld [vmem:[#allocation2 + $0x90] sm:$0xff]
          %v2137 = vld [vmem:[#allocation2 + $0x98] sm:$0xff]
          %v2138 = vld [vmem:[#allocation2 + $0xa0] sm:$0xff]
          %v2139 = vld [vmem:[#allocation2 + $0xa8] sm:$0xff]
          %v2140 = vld [vmem:[#allocation2 + $0xb0] sm:$0xff]
          %v2141 = vld [vmem:[#allocation2 + $0xb8] sm:$0xff]
          %v2142 = vld [vmem:[#allocation2 + $0xc0] sm:$0xff]
          %v2143 = vld [vmem:[#allocation2 + $0xc8] sm:$0xff]
          %v2144 = vld [vmem:[#allocation2 + $0xd0] sm:$0xff]
          %v2145 = vld [vmem:[#allocation2 + $0xd8] sm:$0xff]
          %v2146 = vld [vmem:[#allocation2 + $0xe0] sm:$0xff]
          %v2147 = vld [vmem:[#allocation2 + $0xe8] sm:$0xff]
          %v2148 = vld [vmem:[#allocation2 + $0xf0] sm:$0xff]
          %v2149 = vld [vmem:[#allocation2 + $0xf8] sm:$0xff]
          %v2150 = vld [vmem:[%s2] sm:$0x1]
          %v2152 = vlaneseq
          %v2153 = vshrl.u32 %v2152, 7
          %v2154 = vsub.s32 0, %v2153
          %v2155 = vrot.slane %v2150, %v2154
          %v2157 = vmul.f32 %v2118, %v2155
          %v2158 = vmul.f32 %v2119, %v2155
          %v2159 = vmul.f32 %v2120, %v2155
          %v2160 = vmul.f32 %v2121, %v2155
          %v2161 = vmul.f32 %v2122, %v2155
          %v2162 = vmul.f32 %v2123, %v2155
          %v2163 = vmul.f32 %v2124, %v2155
          %v2164 = vmul.f32 %v2125, %v2155
          %v2165 = vmul.f32 %v2126, %v2155
          %v2166 = vmul.f32 %v2127, %v2155
          %v2167 = vmul.f32 %v2128, %v2155
          %v2168 = vmul.f32 %v2129, %v2155
          %v2169 = vmul.f32 %v2130, %v2155
          %v2170 = vmul.f32 %v2131, %v2155
          %v2171 = vmul.f32 %v2132, %v2155
          %v2172 = vmul.f32 %v2133, %v2155
          %v2173 = vmul.f32 %v2134, %v2155
          %v2174 = vmul.f32 %v2135, %v2155
          %v2175 = vmul.f32 %v2136, %v2155
          %v2176 = vmul.f32 %v2137, %v2155
          %v2177 = vmul.f32 %v2138, %v2155
          %v2178 = vmul.f32 %v2139, %v2155
          %v2179 = vmul.f32 %v2140, %v2155
          %v2180 = vmul.f32 %v2141, %v2155
          %v2181 = vmul.f32 %v2142, %v2155
          %v2182 = vmul.f32 %v2143, %v2155
          %v2183 = vmul.f32 %v2144, %v2155
          %v2184 = vmul.f32 %v2145, %v2155
          %v2185 = vmul.f32 %v2146, %v2155
          %v2186 = vmul.f32 %v2147, %v2155
          %v2187 = vmul.f32 %v2148, %v2155
          %v2188 = vmul.f32 %v2149, %v2155
          %v2189 = vpack.c.bf16 %v2158, %v2157
          %v2190 = vpack.c.bf16 %v2160, %v2159
          %v2191 = vpack.c.bf16 %v2162, %v2161
          %v2192 = vpack.c.bf16 %v2164, %v2163
          %v2193 = vpack.c.bf16 %v2166, %v2165
          %v2194 = vpack.c.bf16 %v2168, %v2167
          %v2195 = vpack.c.bf16 %v2170, %v2169
          %v2196 = vpack.c.bf16 %v2172, %v2171
          %v2197 = vpack.c.bf16 %v2174, %v2173
          %v2198 = vpack.c.bf16 %v2176, %v2175
          %v2199 = vpack.c.bf16 %v2178, %v2177
          %v2200 = vpack.c.bf16 %v2180, %v2179
          %v2201 = vpack.c.bf16 %v2182, %v2181
          %v2202 = vpack.c.bf16 %v2184, %v2183
          %v2203 = vpack.c.bf16 %v2186, %v2185
          %v2204 = vpack.c.bf16 %v2188, %v2187
          %v2221 = vunpack.c.l.b16 %v2189
          %v2222 = vunpack.c.h.b16 %v2189
          %v2223 = vunpack.c.l.b16 %v2190
          %v2224 = vunpack.c.h.b16 %v2190
          %v2225 = vunpack.c.l.b16 %v2191
          %v2226 = vunpack.c.h.b16 %v2191
          %v2227 = vunpack.c.l.b16 %v2192
          %v2228 = vunpack.c.h.b16 %v2192
          %v2229 = vunpack.c.l.b16 %v2193
          %v2230 = vunpack.c.h.b16 %v2193
          %v2231 = vunpack.c.l.b16 %v2194
          %v2232 = vunpack.c.h.b16 %v2194
          %v2233 = vunpack.c.l.b16 %v2195
          %v2234 = vunpack.c.h.b16 %v2195
          %v2235 = vunpack.c.l.b16 %v2196
          %v2236 = vunpack.c.h.b16 %v2196
          %v2237 = vunpack.c.l.b16 %v2197
          %v2238 = vunpack.c.h.b16 %v2197
          %v2239 = vunpack.c.l.b16 %v2198
          %v2240 = vunpack.c.h.b16 %v2198
          %v2241 = vunpack.c.l.b16 %v2199
          %v2242 = vunpack.c.h.b16 %v2199
          %v2243 = vunpack.c.l.b16 %v2200
          %v2244 = vunpack.c.h.b16 %v2200
          %v2245 = vunpack.c.l.b16 %v2201
          %v2246 = vunpack.c.h.b16 %v2201
          %v2247 = vunpack.c.l.b16 %v2202
          %v2248 = vunpack.c.h.b16 %v2202
          %v2249 = vunpack.c.l.b16 %v2203
          %v2250 = vunpack.c.h.b16 %v2203
          %v2251 = vunpack.c.l.b16 %v2204
          %v2252 = vunpack.c.h.b16 %v2204
          %v2253 = vpack.c.b16 %v2221, %v2221
          %v2254 = vpack.c.b16 %v2222, %v2222
          %v2255 = vpack.c.b16 %v2223, %v2223
          %v2256 = vpack.c.b16 %v2224, %v2224
          %v2257 = vpack.c.b16 %v2225, %v2225
          %v2258 = vpack.c.b16 %v2226, %v2226
          %v2259 = vpack.c.b16 %v2227, %v2227
          %v2260 = vpack.c.b16 %v2228, %v2228
          %v2261 = vpack.c.b16 %v2229, %v2229
          %v2262 = vpack.c.b16 %v2230, %v2230
          %v2263 = vpack.c.b16 %v2231, %v2231
          %v2264 = vpack.c.b16 %v2232, %v2232
          %v2265 = vpack.c.b16 %v2233, %v2233
          %v2266 = vpack.c.b16 %v2234, %v2234
          %v2267 = vpack.c.b16 %v2235, %v2235
          %v2268 = vpack.c.b16 %v2236, %v2236
          %v2269 = vpack.c.b16 %v2237, %v2237
          %v2270 = vpack.c.b16 %v2238, %v2238
          %v2271 = vpack.c.b16 %v2239, %v2239
          %v2272 = vpack.c.b16 %v2240, %v2240
          %v2273 = vpack.c.b16 %v2241, %v2241
          %v2274 = vpack.c.b16 %v2242, %v2242
          %v2275 = vpack.c.b16 %v2243, %v2243
          %v2276 = vpack.c.b16 %v2244, %v2244
          %v2277 = vpack.c.b16 %v2245, %v2245
          %v2278 = vpack.c.b16 %v2246, %v2246
          %v2279 = vpack.c.b16 %v2247, %v2247
          %v2280 = vpack.c.b16 %v2248, %v2248
          %v2281 = vpack.c.b16 %v2249, %v2249
          %v2282 = vpack.c.b16 %v2250, %v2250
          %v2283 = vpack.c.b16 %v2251, %v2251
          %v2284 = vpack.c.b16 %v2252, %v2252
          %vm2317 = vcmask 322560
          %2318 = vst.msk [vmem:[%s6] sm:$0xf] %vm2317, %v2253
          %2319 = vst.msk [vmem:[%s6 + $0x4] sm:$0xf] %vm2317, %v2254
          %2320 = vst.msk [vmem:[%s6 + $0x8] sm:$0xf] %vm2317, %v2255
          %2321 = vst.msk [vmem:[%s6 + $0xc] sm:$0xf] %vm2317, %v2256
          %2322 = vst.msk [vmem:[%s6 + $0x10] sm:$0xf] %vm2317, %v2257
          %2323 = vst.msk [vmem:[%s6 + $0x14] sm:$0xf] %vm2317, %v2258
          %2324 = vst.msk [vmem:[%s6 + $0x18] sm:$0xf] %vm2317, %v2259
          %2325 = vst.msk [vmem:[%s6 + $0x1c] sm:$0xf] %vm2317, %v2260
          %2326 = vst.msk [vmem:[%s6 + $0x20] sm:$0xf] %vm2317, %v2261
          %2327 = vst.msk [vmem:[%s6 + $0x24] sm:$0xf] %vm2317, %v2262
          %2328 = vst.msk [vmem:[%s6 + $0x28] sm:$0xf] %vm2317, %v2263
          %2329 = vst.msk [vmem:[%s6 + $0x2c] sm:$0xf] %vm2317, %v2264
          %2330 = vst.msk [vmem:[%s6 + $0x30] sm:$0xf] %vm2317, %v2265
          %2331 = vst.msk [vmem:[%s6 + $0x34] sm:$0xf] %vm2317, %v2266
          %2332 = vst.msk [vmem:[%s6 + $0x38] sm:$0xf] %vm2317, %v2267
          %2333 = vst.msk [vmem:[%s6 + $0x3c] sm:$0xf] %vm2317, %v2268
          %2334 = vst.msk [vmem:[%s6 + $0x40] sm:$0xf] %vm2317, %v2269
          %2335 = vst.msk [vmem:[%s6 + $0x44] sm:$0xf] %vm2317, %v2270
          %2336 = vst.msk [vmem:[%s6 + $0x48] sm:$0xf] %vm2317, %v2271
          %2337 = vst.msk [vmem:[%s6 + $0x4c] sm:$0xf] %vm2317, %v2272
          %2338 = vst.msk [vmem:[%s6 + $0x50] sm:$0xf] %vm2317, %v2273
          %2339 = vst.msk [vmem:[%s6 + $0x54] sm:$0xf] %vm2317, %v2274
          %2340 = vst.msk [vmem:[%s6 + $0x58] sm:$0xf] %vm2317, %v2275
          %2341 = vst.msk [vmem:[%s6 + $0x5c] sm:$0xf] %vm2317, %v2276
          %2342 = vst.msk [vmem:[%s6 + $0x60] sm:$0xf] %vm2317, %v2277
          %2343 = vst.msk [vmem:[%s6 + $0x64] sm:$0xf] %vm2317, %v2278
          %2344 = vst.msk [vmem:[%s6 + $0x68] sm:$0xf] %vm2317, %v2279
          %2345 = vst.msk [vmem:[%s6 + $0x6c] sm:$0xf] %vm2317, %v2280
          %2346 = vst.msk [vmem:[%s6 + $0x70] sm:$0xf] %vm2317, %v2281
          %2347 = vst.msk [vmem:[%s6 + $0x74] sm:$0xf] %vm2317, %v2282
          %2348 = vst.msk [vmem:[%s6 + $0x78] sm:$0xf] %vm2317, %v2283
          %2349 = vst.msk [vmem:[%s6 + $0x7c] sm:$0xf] %vm2317, %v2284
        $region52: #{tpu_custom_call.1} parent=39 // pred_fallthru
          _
        // Predicated region
        $region53: #{tpu_custom_call.1} parent=39 // pred_check
          %p2350 = pneg %p150
        $region54: #{tpu_custom_call.1} parent=39 // pred_check_branch
          %2352 = sbr.rel (%p2350) target = $region56
        $region55: #{tpu_custom_call.1} parent=39 // pred_region
          %s2354 = ssub.s32 4096, 4096
          %2355 = vsyncadd [#allocation5], %s2354
          %s2356 = sshll.u32 [#allocation6], 4
          %s2357 = int_to_ptr.vmem [resolvable:$true] %s2356
          %2362 = dma.vmem_to_hbm [thread:$0]  %s2357, 4096, %s5, [#allocation5], 128, 128, 8
        $region56: #{tpu_custom_call.1} parent=39 // pred_fallthru
          _
        // Predicated region
        $region57: #{tpu_custom_call.1} parent=39 // pred_check
          %p2363 = pneg %p171
        $region58: #{tpu_custom_call.1} parent=39 // pred_check_branch
          %2365 = sbr.rel (%p2363) target = $region60
        $region59: #{tpu_custom_call.1} parent=39 // pred_region
          _
        $region60: #{tpu_custom_call.1} parent=39 // pred_fallthru
          _
        // Predicated region
        $region61: #{tpu_custom_call.1} parent=39 // pred_check
          %p2366 = pneg %p150
        $region62: #{tpu_custom_call.1} parent=39 // pred_check_branch
          %2368 = sbr.rel (%p2366) target = $region64
        $region63: #{tpu_custom_call.1} parent=39 // pred_region
          %2369 = dma.done [#allocation5], 4096
        $region64: #{tpu_custom_call.1} parent=39 // pred_fallthru
          _
        // Predicated region
        $region65: #{tpu_custom_call.1} parent=39 // pred_check
          %p2370 = pneg %p171
        $region66: #{tpu_custom_call.1} parent=39 // pred_check_branch
          %2372 = sbr.rel (%p2370) target = $region68
        $region67: #{tpu_custom_call.1} parent=39 // pred_region
          _
        $region68: #{tpu_custom_call.1} parent=39 // pred_fallthru
          _
      $region40: #{tpu_custom_call.1} parent=5 // pred_fallthru
        _
      %p2373 = scmp.le.s32.totalorder 2, %s17
      // Predicated region
      $region69: #{tpu_custom_call.1} parent=5 // pred_check
        %p2374 = pneg %p2373
      $region70: #{tpu_custom_call.1} parent=5 // pred_check_branch
        %2376 = sbr.rel (%p2374) target = $region72
      $region71: #{tpu_custom_call.1} parent=5 // pred_region
        %s2377 = ssub.s32 %s17, 2
      $region72: #{tpu_custom_call.1} parent=5 // pred_fallthru
        _
    $region6: #{tpu_custom_call.1} parent=1 // loop_footer
      %s21 = sadd.s32 1, %s17
    $region7: #{tpu_custom_call.1} parent=1 // loop_footer_branch
      %16 = sbr.rel target = $region3
    $region8: #{tpu_custom_call.1} parent=1 // loop_exit
      _
    %2378 = vsyncpa [#allocation4], 1
    %s2379 = scalar_lea.sflag [#allocation4], 1
    %2380 = vsyncpa %s2379, 1
    %2381 = vsyncpa [#allocation5], 1
    %s2382 = scalar_lea.sflag [#allocation5], 1
    %2383 = vsyncpa %s2382, 1

</llo_original>
